<compile_context>
chip_gen: v7x
topology: tpu7x:2x2x1
jax: 0.10.0
libtpu: 0.0.40
codegen_flags: <defaults>
</compile_context>

<pallas_src>
import functools

import jax
import jax.numpy as jnp
from jax.experimental import pallas as pl
from jax.experimental.pallas import tpu as pltpu


def _round_up(x, m):
    return ((x + m - 1) // m) * m


# ----------------------------------------------------------------------------
# Fused Pallas kernel (one grid step = one tile of image rows, full text batch)
# ----------------------------------------------------------------------------

def clip_whiten_fused_kernel(x_img_ref, pooled_ref, wi_ref, bi_ref, wt_ref, bt_ref,
                             scale_ref, logits_ref, *, eps):
    # ---- image branch (whitening pre-folded into wi/bi): bf16 MXU operands, f32 acc
    img = (jnp.dot(x_img_ref[...], wi_ref[...], preferred_element_type=jnp.float32)
           + bi_ref[...])                                               # (TM, D) f32

    # ---- text branch (pre-pooled in wrapper): folded projection, recomputed per tile
    txt = (jnp.dot(pooled_ref[...], wt_ref[...], preferred_element_type=jnp.float32)
           + bt_ref[...])                                               # (B_pad, D) f32

    # ---- L2 normalize rows: x * rsqrt(sum(x^2) + eps)  (EUP rsqrt, no divide).
    # exp(logit_scale) is precomputed in the wrapper; fold it into the image rows'
    # (TM, 1) rsqrt factor instead of a full (TM, B_pad) multiply on the output.
    scale = scale_ref[0]
    img_n = img * (scale * jax.lax.rsqrt(jnp.sum(img * img, axis=1, keepdims=True) + eps))
    txt_n = txt * jax.lax.rsqrt(jnp.sum(txt * txt, axis=1, keepdims=True) + eps)

    # ---- scaled similarity: contract last dims of both operands (no .T materialized),
    # bf16 MXU operands (normalized features are O(1)), f32 accumulation.
    logits_ref[...] = jax.lax.dot_general(
        img_n.astype(jnp.bfloat16), txt_n.astype(jnp.bfloat16),
        dimension_numbers=(((1,), (1,)), ((), ())),
        preferred_element_type=jnp.float32)                             # (TM, B_pad) f32


# ----------------------------------------------------------------------------
# Model wrapper (parameter setup, whitening fold, flatten, gather + pool, padding)
# ----------------------------------------------------------------------------

class CLIPWithWhiteningPallas:
    """Synthetic CLIP + whitening; forward pass is one fused Pallas TPU kernel."""

    def __init__(self, key, *, channels=4, spatial=16, vocab=32, txt_embed=128,
                 feat_dim=128, white_dim=128):
        img_in = channels * spatial * spatial
        ks = jax.random.split(key, 7)
        s = 0.02
        # synthetic clip_model parameters (f32, like the PyTorch module)
        w_img = s * jax.random.normal(ks[0], (img_in, feat_dim), jnp.float32)
        b_img = s * jax.random.normal(ks[1], (feat_dim,), jnp.float32)
        self.tok_emb = s * jax.random.normal(ks[2], (vocab, txt_embed), jnp.float32)
        w_txt = s * jax.random.normal(ks[3], (txt_embed, feat_dim), jnp.float32)
        b_txt = s * jax.random.normal(ks[4], (feat_dim,), jnp.float32)
        self.logit_scale = jnp.asarray(jnp.log(1.0 / 0.07), jnp.float32)  # CLIP init
        # whitener parameters: y = (x - mu) @ W_white
        white_mu = s * jax.random.normal(ks[5], (feat_dim,), jnp.float32)
        white_w = (s * jax.random.normal(ks[6], (feat_dim, white_dim), jnp.float32)
                   + jnp.eye(feat_dim, white_dim, dtype=jnp.float32))

        # ---- fold whitening into the encoder projections (exact algebra):
        #      whiten(x @ W + b) = x @ (W @ Ww) + (b - mu) @ Ww
        # Folded weights become bf16 MXU operands; biases stay f32 (VPU epilogue).
        self.w_img_fold = (w_img @ white_w).astype(jnp.bfloat16)            # (img_in, Dw)
        self.b_img_fold = ((b_img - white_mu) @ white_w).reshape(1, -1)     # (1, Dw) f32
        self.w_txt_fold = (w_txt @ white_w).astype(jnp.bfloat16)            # (E, Dw)
        self.b_txt_fold = ((b_txt - white_mu) @ white_w).reshape(1, -1)     # (1, Dw) f32

    def forward(self, image, text):
        b = image.shape[0]
        # NCHW -> [B, C*H*W]; bf16 cast for the MXU operand
        x_img = image.reshape(b, -1).astype(jnp.bfloat16)
        # token-embedding gather + mean-pool fused in the wrapper (XLA fuses with the
        # gather): feeds (B, E) instead of (B, L, E) -> L x less text-branch DMA.
        pooled = jnp.mean(self.tok_emb[text], axis=1).astype(jnp.bfloat16)

        # Pad the batch to a multiple of 128: lane-dense output stores, full MXU
        # M-tiles, and >=2 grid steps for megacore sharding. Padded zero rows only
        # produce extra output rows/cols that are sliced off below (rows of a matmul
        # and per-row normalization are independent, so real rows are unaffected).
        b_pad = _round_up(max(b, 128), 128)
        if b_pad != b:
            x_img = jnp.pad(x_img, ((0, b_pad - b), (0, 0)))
            pooled = jnp.pad(pooled, ((0, b_pad - b), (0, 0)))

        tm = 64 if b_pad == 128 else 128          # >=2 grid steps -> both v7x TCs busy
        grid = (b_pad // tm,)

        # exp(logit_scale) hoisted out of the kernel (review item); SMEM scalar input.
        scale = jnp.exp(self.logit_scale).reshape(1)

        kernel = functools.partial(clip_whiten_fused_kernel, eps=1e-12)
        img_in = x_img.shape[1]
        embed = pooled.shape[1]

        logits_pad = pl.pallas_call(
            kernel,
            out_shape=jax.ShapeDtypeStruct((b_pad, b_pad), jnp.float32),
            grid=grid,
            in_specs=[
                pl.BlockSpec((tm, img_in), lambda i: (i, 0)),            # image tile
                pl.BlockSpec((b_pad, embed), lambda i: (0, 0)),          # full pooled text
                pl.BlockSpec(self.w_img_fold.shape, lambda i: (0, 0)),   # resident weights
                pl.BlockSpec(self.b_img_fold.shape, lambda i: (0, 0)),
                pl.BlockSpec(self.w_txt_fold.shape, lambda i: (0, 0)),
                pl.BlockSpec(self.b_txt_fold.shape, lambda i: (0, 0)),
                pl.BlockSpec(memory_space=pltpu.MemorySpace.SMEM),       # exp(logit_scale)
            ],
            out_specs=pl.BlockSpec((tm, b_pad), lambda i: (i, 0)),
            compiler_params=pltpu.CompilerParams(
                dimension_semantics=("parallel",)),
        )(x_img, pooled, self.w_img_fold, self.b_img_fold,
          self.w_txt_fold, self.b_txt_fold, scale)

        logits_per_image = logits_pad[:b, :b]
        # logits_per_text is just the transpose; a (B,B) wrapper transpose avoids any
        # in-kernel XLU transpose / masked partial stores.
        logits_per_text = logits_per_image.T
        return logits_per_image, logits_per_text

    __call__ = forward


# ----------------------------------------------------------------------------
# Reference (pure JAX mirror of the same folded / bf16-operand math)
# ----------------------------------------------------------------------------

def reference_forward(model, image, text):
    b = image.shape[0]
    x_img = image.reshape(b, -1).astype(jnp.bfloat16)
    pooled = jnp.mean(model.tok_emb[text], axis=1).astype(jnp.bfloat16)

    img = (jnp.dot(x_img, model.w_img_fold, preferred_element_type=jnp.float32)
           + model.b_img_fold)
    txt = (jnp.dot(pooled, model.w_txt_fold, preferred_element_type=jnp.float32)
           + model.b_txt_fold)

    scale = jnp.exp(model.logit_scale)
    img_n = img * (scale * jax.lax.rsqrt(jnp.sum(img * img, axis=1, keepdims=True) + 1e-12))
    txt_n = txt * jax.lax.rsqrt(jnp.sum(txt * txt, axis=1, keepdims=True) + 1e-12)

    lpi = jax.lax.dot_general(
        img_n.astype(jnp.bfloat16), txt_n.astype(jnp.bfloat16),
        dimension_numbers=(((1,), (1,)), ((), ())),
        preferred_element_type=jnp.float32)
    return lpi, lpi.T


if __name__ == "__main__":
    key = jax.random.PRNGKey(0)
    k_model, k_img, k_txt = jax.random.split(key, 3)

    B, C, H, W = 2, 4, 16, 16
    L, V = 8, 32

    model = CLIPWithWhiteningPallas(k_model, channels=C, spatial=H, vocab=V)

    image = jax.random.normal(k_img, (B, C, H, W), jnp.float32)   # NCHW like PyTorch
    text = jax.random.randint(k_txt, (B, L), 0, V, jnp.int32)     # token ids

    logits_per_image, logits_per_text = model(image, text)
    jax.block_until_ready((logits_per_image, logits_per_text))

    ref_i, ref_t = reference_forward(model, image, text)
    assert logits_per_image.shape == (B, B) and logits_per_text.shape == (B, B)
    assert jnp.allclose(logits_per_image, ref_i, atol=2e-3, rtol=2e-3)
    assert jnp.allclose(logits_per_text, ref_t, atol=2e-3, rtol=2e-3)
    assert jnp.allclose(logits_per_text, logits_per_image.T, atol=1e-6)

    print("KERNEL_OK")
</pallas_src>

<mosaic_0001>
module attributes {stable_mosaic.version = 11 : i64} {
  func.func @clip_whiten_fused_kernel(%arg0: i32, %arg1: memref<64x1024xbf16, #tpu.memory_space<vmem>>, %arg2: memref<128x128xbf16, #tpu.memory_space<vmem>>, %arg3: memref<1024x128xbf16, #tpu.memory_space<vmem>>, %arg4: memref<1x128xf32, #tpu.memory_space<vmem>>, %arg5: memref<128x128xbf16, #tpu.memory_space<vmem>>, %arg6: memref<1x128xf32, #tpu.memory_space<vmem>>, %arg7: memref<1xf32, #tpu.memory_space<smem>>, %arg8: memref<64x128xf32, #tpu.memory_space<vmem>>) attributes {dimension_semantics = [#tpu.dimension_semantics<parallel>], iteration_bounds = array<i64: 2>, scalar_prefetch = 0 : i64, scratch_operands = 0 : i64, tpu.core_type = #tpu.core_type<tc>, window_params = [{transform_indices = @transform_0, window_bounds = array<i64: 64, 1024>}, {pipeline_mode = #tpu.pipeline_mode<synchronous>, transform_indices = @transform_1, window_bounds = array<i64: 128, 128>}, {pipeline_mode = #tpu.pipeline_mode<synchronous>, transform_indices = @transform_2, window_bounds = array<i64: 1024, 128>}, {pipeline_mode = #tpu.pipeline_mode<synchronous>, transform_indices = @transform_3, window_bounds = array<i64: 1, 128>}, {pipeline_mode = #tpu.pipeline_mode<synchronous>, transform_indices = @transform_4, window_bounds = array<i64: 128, 128>}, {pipeline_mode = #tpu.pipeline_mode<synchronous>, transform_indices = @transform_5, window_bounds = array<i64: 1, 128>}, {transform_indices = @transform_6, window_bounds = array<i64: 1>}, {transform_indices = @transform_7, window_bounds = array<i64: 64, 128>}]} {
    %c0 = arith.constant 0 : index
    %c0_0 = arith.constant 0 : index
    %0 = vector.load %arg1[%c0, %c0_0] : memref<64x1024xbf16, #tpu.memory_space<vmem>>, vector<64x1024xbf16>
    %c0_1 = arith.constant 0 : index
    %c0_2 = arith.constant 0 : index
    %1 = vector.load %arg3[%c0_1, %c0_2] : memref<1024x128xbf16, #tpu.memory_space<vmem>>, vector<1024x128xbf16>
    %cst = arith.constant dense<0.000000e+00> : vector<64x128xf32>
    %2 = tpu.matmul %0, %1, %cst {dimension_numbers = #tpu.dot_dimension_numbers<[1], [0], [0], [1], [0, 0, 1, 1], [], []>} : vector<64x1024xbf16>, vector<1024x128xbf16>, vector<64x128xf32> -> vector<64x128xf32>
    %c0_3 = arith.constant 0 : index
    %c0_4 = arith.constant 0 : index
    %3 = vector.load %arg4[%c0_3, %c0_4] : memref<1x128xf32, #tpu.memory_space<vmem>>, vector<1x128xf32>
    %4 = vector.broadcast %3 : vector<1x128xf32> to vector<64x128xf32>
    %5 = arith.addf %2, %4 : vector<64x128xf32>
    %c0_5 = arith.constant 0 : index
    %c0_6 = arith.constant 0 : index
    %6 = vector.load %arg2[%c0_5, %c0_6] : memref<128x128xbf16, #tpu.memory_space<vmem>>, vector<128x128xbf16>
    %c0_7 = arith.constant 0 : index
    %c0_8 = arith.constant 0 : index
    %7 = vector.load %arg5[%c0_7, %c0_8] : memref<128x128xbf16, #tpu.memory_space<vmem>>, vector<128x128xbf16>
    %cst_9 = arith.constant dense<0.000000e+00> : vector<128x128xf32>
    %8 = tpu.matmul %6, %7, %cst_9 {dimension_numbers = #tpu.dot_dimension_numbers<[1], [0], [0], [1], [0, 0, 1, 1], [], []>} : vector<128x128xbf16>, vector<128x128xbf16>, vector<128x128xf32> -> vector<128x128xf32>
    %c0_10 = arith.constant 0 : index
    %c0_11 = arith.constant 0 : index
    %9 = vector.load %arg6[%c0_10, %c0_11] : memref<1x128xf32, #tpu.memory_space<vmem>>, vector<1x128xf32>
    %10 = vector.broadcast %9 : vector<1x128xf32> to vector<128x128xf32>
    %11 = arith.addf %8, %10 : vector<128x128xf32>
    %c0_12 = arith.constant 0 : index
    %12 = memref.load %arg7[%c0_12] : memref<1xf32, #tpu.memory_space<smem>>
    %13 = arith.mulf %5, %5 : vector<64x128xf32>
    %cst_13 = arith.constant dense<0.000000e+00> : vector<64xf32>
    %14 = vector.multi_reduction <add>, %13, %cst_13 [1] : vector<64x128xf32> to vector<64xf32>
    %15 = vector.shape_cast %14 : vector<64xf32> to vector<64x1xf32>
    %cst_14 = arith.constant 9.99999996E-13 : f32
    %16 = vector.broadcast %cst_14 : f32 to vector<64x1xf32>
    %17 = arith.addf %15, %16 : vector<64x1xf32>
    %18 = math.rsqrt %17 : vector<64x1xf32>
    %19 = vector.broadcast %12 : f32 to vector<64x1xf32>
    %20 = arith.mulf %19, %18 : vector<64x1xf32>
    %21 = vector.broadcast %20 : vector<64x1xf32> to vector<64x128xf32>
    %22 = arith.mulf %5, %21 : vector<64x128xf32>
    %23 = arith.mulf %11, %11 : vector<128x128xf32>
    %cst_15 = arith.constant dense<0.000000e+00> : vector<128xf32>
    %24 = vector.multi_reduction <add>, %23, %cst_15 [1] : vector<128x128xf32> to vector<128xf32>
    %25 = vector.shape_cast %24 : vector<128xf32> to vector<128x1xf32>
    %cst_16 = arith.constant 9.99999996E-13 : f32
    %26 = vector.broadcast %cst_16 : f32 to vector<128x1xf32>
    %27 = arith.addf %25, %26 : vector<128x1xf32>
    %28 = math.rsqrt %27 : vector<128x1xf32>
    %29 = vector.broadcast %28 : vector<128x1xf32> to vector<128x128xf32>
    %30 = arith.mulf %11, %29 : vector<128x128xf32>
    %31 = arith.truncf %22 : vector<64x128xf32> to vector<64x128xbf16>
    %32 = arith.truncf %30 : vector<128x128xf32> to vector<128x128xbf16>
    %cst_17 = arith.constant dense<0.000000e+00> : vector<64x128xf32>
    %33 = tpu.matmul %31, %32, %cst_17 {dimension_numbers = #tpu.dot_dimension_numbers<[1], [1], [0], [0], [0, 0, 1, 0], [], []>} : vector<64x128xbf16>, vector<128x128xbf16>, vector<64x128xf32> -> vector<64x128xf32>
    %c0_18 = arith.constant 0 : index
    %c0_19 = arith.constant 0 : index
    %34 = vector.load %arg8[%c0_18, %c0_19] : memref<64x128xf32, #tpu.memory_space<vmem>>, vector<64x128xf32>
    tpu.vector_store %arg8[%c0_18, %c0_19], %33 {strides = array<i32>} : memref<64x128xf32, #tpu.memory_space<vmem>>, vector<64x128xf32>,
    return
  }
  func.func @transform_0(%arg0: i32) -> (i32, i32) {
    %c0_i32 = arith.constant 0 : i32
    %c0_i32_0 = arith.constant 0 : i32
    return %arg0, %c0_i32 : i32, i32
  }
  func.func @transform_1(%arg0: i32) -> (i32, i32) {
    %c0_i32 = arith.constant 0 : i32
    %c0_i32_0 = arith.constant 0 : i32
    %c0_i32_1 = arith.constant 0 : i32
    return %c0_i32, %c0_i32_0 : i32, i32
  }
  func.func @transform_2(%arg0: i32) -> (i32, i32) {
    %c0_i32 = arith.constant 0 : i32
    %c0_i32_0 = arith.constant 0 : i32
    %c0_i32_1 = arith.constant 0 : i32
    return %c0_i32, %c0_i32_0 : i32, i32
  }
  func.func @transform_3(%arg0: i32) -> (i32, i32) {
    %c0_i32 = arith.constant 0 : i32
    %c0_i32_0 = arith.constant 0 : i32
    %c0_i32_1 = arith.constant 0 : i32
    return %c0_i32, %c0_i32_0 : i32, i32
  }
  func.func @transform_4(%arg0: i32) -> (i32, i32) {
    %c0_i32 = arith.constant 0 : i32
    %c0_i32_0 = arith.constant 0 : i32
    %c0_i32_1 = arith.constant 0 : i32
    return %c0_i32, %c0_i32_0 : i32, i32
  }
  func.func @transform_5(%arg0: i32) -> (i32, i32) {
    %c0_i32 = arith.constant 0 : i32
    %c0_i32_0 = arith.constant 0 : i32
    %c0_i32_1 = arith.constant 0 : i32
    return %c0_i32, %c0_i32_0 : i32, i32
  }
  func.func @transform_6(%arg0: i32) -> i32 {
    %c0_i32 = arith.constant 0 : i32
    %c0_i32_0 = arith.constant 0 : i32
    return %c0_i32 : i32
  }
  func.func @transform_7(%arg0: i32) -> (i32, i32) {
    %c0_i32 = arith.constant 0 : i32
    %c0_i32_0 = arith.constant 0 : i32
    return %arg0, %c0_i32 : i32, i32
  }
}

</mosaic_0001>

<llo_original>
// kernel: tpu_custom_call.1
$region0: #{tpu_custom_call.1}
  #allocation0 [shape = 'u32[]', space=smem, size = 0x4, offset = 0x4, fixed_abs, tag = 'smem constant byte address 0x4 - core index']
  #allocation1 [shape = 'u32[144,128]{1,0:T(1,128)}', space=vmem, size = 0x12000, scoped, tag = 'internal scratch']
  #allocation2 [shape = 'f32[1]{0:T(128)S(6)}', space=smem, size = 0x200, scoped, tag = 'scoped memory for tpu_custom_call.1']
  %s0 = inlined_call_operand.hbm [shape: bf16[128,1024], index: 0, kind: input, shape index: {}]
  %s1 = inlined_call_operand.hbm [shape: bf16[128,128], index: 1, kind: input, shape index: {}]
  %s2 = inlined_call_operand.hbm [shape: bf16[1024,128], index: 2, kind: input, shape index: {}]
  %s3 = inlined_call_operand.vmem [shape: f32[1,128], index: 3, kind: input, shape index: {}]
  %s4 = inlined_call_operand.hbm [shape: bf16[128,128], index: 4, kind: input, shape index: {}]
  %s5 = inlined_call_operand.vmem [shape: f32[1,128], index: 5, kind: input, shape index: {}]
  %s6 = inlined_call_operand.<no memory space> [shape: f32[1], index: 6, kind: input, shape index: {}]
  %s7 = inlined_call_operand.hbm [shape: f32[128,128], index: 7, kind: output, shape index: {}]
  %s8 = sld [smem:[#allocation0]]
  $region77: #{tpu_custom_call.1} parent=0
    _
  %s10 = ssub.s32 1, %s8
  %s11 = scalar_select 0, %s10, %s8
  %12 = sst [smem:[#allocation2]] %s6
  $region1: #{tpu_custom_call.1} parent=0
    #allocation3 [shape = 'u8[262144]{0}', space=vmem, size = 0x40000, scoped, tag = 'input window, operand 0']
    #allocation4 [shape = 's32[2]{0}', space=sflag, size = 0x8, scoped, tag = 'scoped memory for tpu_custom_call.1']
    #allocation5 [shape = 's32[2]{0}', space=sflag, size = 0x8, scoped, tag = 'scoped memory for tpu_custom_call.1']
    #allocation6 [shape = 'u8[32768]{0}', space=vmem, size = 0x8000, scoped, tag = 'input window, operand 1, single buffered']
    #allocation7 [shape = 's32[1]{0}', space=sflag, size = 0x4, scoped, tag = 'scoped memory for tpu_custom_call.1']
    #allocation8 [shape = 'u8[262144]{0}', space=vmem, size = 0x40000, scoped, tag = 'input window, operand 2, single buffered']
    #allocation9 [shape = 'u8[32768]{0}', space=vmem, size = 0x8000, scoped, tag = 'input window, operand 4, single buffered']
    #allocation10 [shape = 's32[1]{0}', space=sflag, size = 0x4, scoped, tag = 'scoped memory for tpu_custom_call.1']
    #allocation11 [shape = 'u8[65536]{0}', space=vmem, size = 0x10000, scoped, tag = 'output window, operand 0']
    %13 = vsyncpa [#allocation4], 0
    %s14 = scalar_lea.sflag [#allocation4], 1
    %15 = vsyncpa %s14, 0
    %16 = vsyncpa [#allocation7], 0
    %17 = vsyncpa [#allocation10], 0
    %18 = vsyncpa [#allocation5], 0
    %s19 = scalar_lea.sflag [#allocation5], 1
    %20 = vsyncpa %s19, 0
    loop: start=0, step=1, limit=4
    $region2: #{tpu_custom_call.1} parent=1 // loop_pre_header
      _
    $region3: #{tpu_custom_call.1} parent=1 // loop_header
      %s22 = sphi 0, %s26
      %p23 = scmp.ge.s32.totalorder %s22, 4
      %s32 = sphi 0, %s34
      %s35 = sphi 0, %s32
      %s36 = sphi 0, %s35
      %s52 = sphi 0, %s36
      %s56 = sphi 0, %s56
      %s58 = sphi 0, %s56
      %s59 = sphi 0, %s58
      %s73 = sphi 0, %s59
      %s77 = sphi 0, %s77
      %s79 = sphi 0, %s77
      %s80 = sphi 0, %s79
      %s94 = sphi 0, %s80
      %s98 = sphi 0, %s98
      %s100 = sphi 0, %s98
      %s101 = sphi 0, %s100
      %s115 = sphi 0, %s101
      %s119 = sphi 0, %s119
      %s121 = sphi 0, %s119
      %s122 = sphi 0, %s121
      %s136 = sphi 0, %s122
      %s140 = sphi 0, %s140
      %s142 = sphi 0, %s140
      %s143 = sphi 0, %s142
      %s157 = sphi 0, %s143
      %s161 = sphi 0, %s161
      %s163 = sphi 0, %s161
      %s164 = sphi 0, %s163
      %s178 = sphi 0, %s164
      %s184 = sphi 0, %s186
      %s187 = sphi 0, %s184
      %s188 = sphi 0, %s187
      %s204 = sphi 0, %s188
    $region4: #{tpu_custom_call.1} parent=1 // loop_header_branch
      %25 = sbr.rel (%p23) target = $region8
    $region5: #{tpu_custom_call.1} parent=1 // loop_body
      %s27 = ssub.s32 %s22, 1
      %s28 = ssub.s32 %s22, 2
      %s29 = sadd.s32 %s22, 1
      %s30 = ssub.s32 %s22, %s29
      %p31 = scmp.eq.s32.totalorder %s30, 0
      %s33 = sadd.s32 %s32, 1
      %s34 = scalar_select %p31, %s32, %s33
      %p37 = pneg %p31
      %p38 = scmp.eq.s32.totalorder %s22, 1
      %p39 = por %p37, %p38
      %p40 = scmp.ne.s32.totalorder %s32, %s35
      %p41 = scmp.eq.s32.totalorder %s22, 0
      %p42 = por %p40, %p41
      %p43 = scmp.ne.s32.totalorder %s32, %s35
      %p44 = scmp.eq.s32.totalorder %s27, 1
      %p45 = por %p43, %p44
      %p46 = scmp.ne.s32.totalorder %s35, %s36
      %p47 = scmp.eq.s32.totalorder %s27, 0
      %p48 = por %p46, %p47
      %p49 = scmp.ne.s32.totalorder %s35, %s36
      %p50 = scmp.eq.s32.totalorder %s28, 1
      %p51 = por %p49, %p50
      %p53 = scmp.ne.s32.totalorder %s36, %s52
      %p54 = scmp.eq.s32.totalorder %s28, 0
      %p55 = por %p53, %p54
      %s57 = sadd.s32 %s56, 1
      %p60 = scmp.eq.s32.totalorder %s22, 1
      %p61 = scmp.ne.s32.totalorder %s56, %s58
      %p62 = scmp.eq.s32.totalorder %s22, 0
      %p63 = por %p61, %p62
      %p64 = scmp.ne.s32.totalorder %s56, %s58
      %p65 = scmp.eq.s32.totalorder %s27, 1
      %p66 = por %p64, %p65
      %p67 = scmp.ne.s32.totalorder %s58, %s59
      %p68 = scmp.eq.s32.totalorder %s27, 0
      %p69 = por %p67, %p68
      %p70 = scmp.ne.s32.totalorder %s58, %s59
      %p71 = scmp.eq.s32.totalorder %s28, 1
      %p72 = por %p70, %p71
      %p74 = scmp.ne.s32.totalorder %s59, %s73
      %p75 = scmp.eq.s32.totalorder %s28, 0
      %p76 = por %p74, %p75
      %s78 = sadd.s32 %s77, 1
      %p81 = scmp.eq.s32.totalorder %s22, 1
      %p82 = scmp.ne.s32.totalorder %s77, %s79
      %p83 = scmp.eq.s32.totalorder %s22, 0
      %p84 = por %p82, %p83
      %p85 = scmp.ne.s32.totalorder %s77, %s79
      %p86 = scmp.eq.s32.totalorder %s27, 1
      %p87 = por %p85, %p86
      %p88 = scmp.ne.s32.totalorder %s79, %s80
      %p89 = scmp.eq.s32.totalorder %s27, 0
      %p90 = por %p88, %p89
      %p91 = scmp.ne.s32.totalorder %s79, %s80
      %p92 = scmp.eq.s32.totalorder %s28, 1
      %p93 = por %p91, %p92
      %p95 = scmp.ne.s32.totalorder %s80, %s94
      %p96 = scmp.eq.s32.totalorder %s28, 0
      %p97 = por %p95, %p96
      %s99 = sadd.s32 %s98, 1
      %p102 = scmp.eq.s32.totalorder %s22, 1
      %p103 = scmp.ne.s32.totalorder %s98, %s100
      %p104 = scmp.eq.s32.totalorder %s22, 0
      %p105 = por %p103, %p104
      %p106 = scmp.ne.s32.totalorder %s98, %s100
      %p107 = scmp.eq.s32.totalorder %s27, 1
      %p108 = por %p106, %p107
      %p109 = scmp.ne.s32.totalorder %s100, %s101
      %p110 = scmp.eq.s32.totalorder %s27, 0
      %p111 = por %p109, %p110
      %p112 = scmp.ne.s32.totalorder %s100, %s101
      %p113 = scmp.eq.s32.totalorder %s28, 1
      %p114 = por %p112, %p113
      %p116 = scmp.ne.s32.totalorder %s101, %s115
      %p117 = scmp.eq.s32.totalorder %s28, 0
      %p118 = por %p116, %p117
      %s120 = sadd.s32 %s119, 1
      %p123 = scmp.eq.s32.totalorder %s22, 1
      %p124 = scmp.ne.s32.totalorder %s119, %s121
      %p125 = scmp.eq.s32.totalorder %s22, 0
      %p126 = por %p124, %p125
      %p127 = scmp.ne.s32.totalorder %s119, %s121
      %p128 = scmp.eq.s32.totalorder %s27, 1
      %p129 = por %p127, %p128
      %p130 = scmp.ne.s32.totalorder %s121, %s122
      %p131 = scmp.eq.s32.totalorder %s27, 0
      %p132 = por %p130, %p131
      %p133 = scmp.ne.s32.totalorder %s121, %s122
      %p134 = scmp.eq.s32.totalorder %s28, 1
      %p135 = por %p133, %p134
      %p137 = scmp.ne.s32.totalorder %s122, %s136
      %p138 = scmp.eq.s32.totalorder %s28, 0
      %p139 = por %p137, %p138
      %s141 = sadd.s32 %s140, 1
      %p144 = scmp.eq.s32.totalorder %s22, 1
      %p145 = scmp.ne.s32.totalorder %s140, %s142
      %p146 = scmp.eq.s32.totalorder %s22, 0
      %p147 = por %p145, %p146
      %p148 = scmp.ne.s32.totalorder %s140, %s142
      %p149 = scmp.eq.s32.totalorder %s27, 1
      %p150 = por %p148, %p149
      %p151 = scmp.ne.s32.totalorder %s142, %s143
      %p152 = scmp.eq.s32.totalorder %s27, 0
      %p153 = por %p151, %p152
      %p154 = scmp.ne.s32.totalorder %s142, %s143
      %p155 = scmp.eq.s32.totalorder %s28, 1
      %p156 = por %p154, %p155
      %p158 = scmp.ne.s32.totalorder %s143, %s157
      %p159 = scmp.eq.s32.totalorder %s28, 0
      %p160 = por %p158, %p159
      %s162 = sadd.s32 %s161, 1
      %p165 = scmp.eq.s32.totalorder %s22, 1
      %p166 = scmp.ne.s32.totalorder %s161, %s163
      %p167 = scmp.eq.s32.totalorder %s22, 0
      %p168 = por %p166, %p167
      %p169 = scmp.ne.s32.totalorder %s161, %s163
      %p170 = scmp.eq.s32.totalorder %s27, 1
      %p171 = por %p169, %p170
      %p172 = scmp.ne.s32.totalorder %s163, %s164
      %p173 = scmp.eq.s32.totalorder %s27, 0
      %p174 = por %p172, %p173
      %p175 = scmp.ne.s32.totalorder %s163, %s164
      %p176 = scmp.eq.s32.totalorder %s28, 1
      %p177 = por %p175, %p176
      %p179 = scmp.ne.s32.totalorder %s164, %s178
      %p180 = scmp.eq.s32.totalorder %s28, 0
      %p181 = por %p179, %p180
      %s182 = ssub.s32 %s22, %s29
      %p183 = scmp.eq.s32.totalorder %s182, 0
      %s185 = sadd.s32 %s184, 1
      %s186 = scalar_select %p183, %s184, %s185
      %p189 = pneg %p183
      %p190 = scmp.eq.s32.totalorder %s22, 1
      %p191 = por %p189, %p190
      %p192 = scmp.ne.s32.totalorder %s184, %s187
      %p193 = scmp.eq.s32.totalorder %s22, 0
      %p194 = por %p192, %p193
      %p195 = scmp.ne.s32.totalorder %s184, %s187
      %p196 = scmp.eq.s32.totalorder %s27, 1
      %p197 = por %p195, %p196
      %p198 = scmp.ne.s32.totalorder %s187, %s188
      %p199 = scmp.eq.s32.totalorder %s27, 0
      %p200 = por %p198, %p199
      %p201 = scmp.ne.s32.totalorder %s187, %s188
      %p202 = scmp.eq.s32.totalorder %s28, 1
      %p203 = por %p201, %p202
      %p205 = scmp.ne.s32.totalorder %s188, %s204
      %p206 = scmp.eq.s32.totalorder %s28, 0
      %p207 = por %p205, %p206
      %p208 = scmp.le.s32.totalorder 1, %s22
      %p209 = scmp.lt.s32.totalorder %s22, 3
      %p210 = pnand %p208, %p209
      %p211 = pneg %p210
      // Predicated region
      $region9: #{tpu_custom_call.1} parent=5 // pred_check
        _
      $region10: #{tpu_custom_call.1} parent=5 // pred_check_branch
        %213 = sbr.rel (%p210) target = $region12
      $region11: #{tpu_custom_call.1} parent=5 // pred_region
        %s214 = ssub.s32 %s22, 1
        // Predicated region
        $region13: #{tpu_custom_call.1} parent=11 // pred_check
          %p215 = pneg %p69
        $region14: #{tpu_custom_call.1} parent=11 // pred_check_branch
          %217 = sbr.rel (%p215) target = $region16
        $region15: #{tpu_custom_call.1} parent=11 // pred_region
          %s219 = ssub.s32 1024, 1024
          %220 = vsyncadd [#allocation7], %s219
          %s221 = sshll.u32 [#allocation6], 4
          %s222 = int_to_ptr.vmem [resolvable:$true] %s221
          %227 = dma.hbm_to_vmem [thread:$0]  %s1, 1024, %s222, [#allocation7], 64, 64, 4
        $region16: #{tpu_custom_call.1} parent=11 // pred_fallthru
          _
        // Predicated region
        $region17: #{tpu_custom_call.1} parent=11 // pred_check
          %p228 = pneg %p90
        $region18: #{tpu_custom_call.1} parent=11 // pred_check_branch
          %230 = sbr.rel (%p228) target = $region20
        $region19: #{tpu_custom_call.1} parent=11 // pred_region
          %s232 = ssub.s32 8192, 8192
          %233 = vsyncadd [#allocation7], %s232
          %s234 = sshll.u32 [#allocation8], 4
          %s235 = int_to_ptr.vmem [resolvable:$true] %s234
          %240 = dma.hbm_to_vmem [thread:$0]  %s2, 8192, %s235, [#allocation7], 64, 64, 4
        $region20: #{tpu_custom_call.1} parent=11 // pred_fallthru
          _
        // Predicated region
        $region21: #{tpu_custom_call.1} parent=11 // pred_check
          %p241 = pneg %p111
        $region22: #{tpu_custom_call.1} parent=11 // pred_check_branch
          %243 = sbr.rel (%p241) target = $region24
        $region23: #{tpu_custom_call.1} parent=11 // pred_region
          _
        $region24: #{tpu_custom_call.1} parent=11 // pred_fallthru
          _
        // Predicated region
        $region25: #{tpu_custom_call.1} parent=11 // pred_check
          %p244 = pneg %p132
        $region26: #{tpu_custom_call.1} parent=11 // pred_check_branch
          %246 = sbr.rel (%p244) target = $region28
        $region27: #{tpu_custom_call.1} parent=11 // pred_region
          %s248 = ssub.s32 1024, 1024
          %249 = vsyncadd [#allocation10], %s248
          %s250 = sshll.u32 [#allocation9], 4
          %s251 = int_to_ptr.vmem [resolvable:$true] %s250
          %256 = dma.hbm_to_vmem [thread:$0]  %s4, 1024, %s251, [#allocation10], 64, 64, 4
        $region28: #{tpu_custom_call.1} parent=11 // pred_fallthru
          _
        // Predicated region
        $region29: #{tpu_custom_call.1} parent=11 // pred_check
          %p257 = pneg %p153
        $region30: #{tpu_custom_call.1} parent=11 // pred_check_branch
          %259 = sbr.rel (%p257) target = $region32
        $region31: #{tpu_custom_call.1} parent=11 // pred_region
          _
        $region32: #{tpu_custom_call.1} parent=11 // pred_fallthru
          _
        // Predicated region
        $region33: #{tpu_custom_call.1} parent=11 // pred_check
          %p260 = pneg %p174
        $region34: #{tpu_custom_call.1} parent=11 // pred_check_branch
          %262 = sbr.rel (%p260) target = $region36
        $region35: #{tpu_custom_call.1} parent=11 // pred_region
          _
        $region36: #{tpu_custom_call.1} parent=11 // pred_fallthru
          _
      $region12: #{tpu_custom_call.1} parent=5 // pred_fallthru
        _
      %p263 = scmp.lt.s32.totalorder %s22, 2
      // Predicated region
      $region37: #{tpu_custom_call.1} parent=5 // pred_check
        %p264 = pneg %p263
      $region38: #{tpu_custom_call.1} parent=5 // pred_check_branch
        %266 = sbr.rel (%p264) target = $region40
      $region39: #{tpu_custom_call.1} parent=5 // pred_region
        // Predicated region
        $region41: #{tpu_custom_call.1} parent=39 // pred_check
          %p267 = pneg %p42
        $region42: #{tpu_custom_call.1} parent=39 // pred_check_branch
          %269 = sbr.rel (%p267) target = $region44
        $region43: #{tpu_custom_call.1} parent=39 // pred_region
          %s270 = sand.u32 %s32, 1
          %s271 = scalar_lea.sflag [#allocation4], %s270
          %s272 = sand.u32 %s32, 1
          %s273 = smul.addr %s272, 256
          %s274 = scalar_lea.vmem [#allocation3], %s273
          %s275 = smul.u32 8, %s22
          %s277 = ssub.s32 4096, 4096
          %278 = vsyncadd %s271, %s277
          %s279 = smul.addr %s275, 8
          %s280 = smul.addr %s279, 64
          %s281 = scalar_lea.hbm %s0, %s280
          %s282 = sshll.u32 %s274, 4
          %s283 = int_to_ptr.vmem [resolvable:$true] %s282
          %288 = dma.hbm_to_vmem [thread:$0]  %s281, 4096, %s283, %s271, 512, 512, 32
        $region44: #{tpu_custom_call.1} parent=39 // pred_fallthru
          _
      $region40: #{tpu_custom_call.1} parent=5 // pred_fallthru
        _
      %p289 = scmp.le.s32.totalorder 1, %s22
      %p290 = scmp.lt.s32.totalorder %s22, 3
      %p291 = pnand %p289, %p290
      %p292 = pneg %p291
      // Predicated region
      $region45: #{tpu_custom_call.1} parent=5 // pred_check
        _
      $region46: #{tpu_custom_call.1} parent=5 // pred_check_branch
        %294 = sbr.rel (%p291) target = $region48
      $region47: #{tpu_custom_call.1} parent=5 // pred_region
        %s295 = ssub.s32 %s22, 1
        %s296 = sand.u32 %s35, 1
        %s297 = scalar_lea.sflag [#allocation4], %s296
        %s298 = sand.u32 %s35, 1
        %s299 = smul.addr %s298, 256
        %s300 = scalar_lea.vmem [#allocation3], %s299
        // Predicated region
        $region49: #{tpu_custom_call.1} parent=47 // pred_check
          %p301 = pneg %p48
        $region50: #{tpu_custom_call.1} parent=47 // pred_check_branch
          %303 = sbr.rel (%p301) target = $region52
        $region51: #{tpu_custom_call.1} parent=47 // pred_region
          %304 = dma.done %s297, 4096
        $region52: #{tpu_custom_call.1} parent=47 // pred_fallthru
          _
        // Predicated region
        $region53: #{tpu_custom_call.1} parent=47 // pred_check
          %p305 = pneg %p69
        $region54: #{tpu_custom_call.1} parent=47 // pred_check_branch
          %307 = sbr.rel (%p305) target = $region56
        $region55: #{tpu_custom_call.1} parent=47 // pred_region
          %308 = dma.done [#allocation7], 1024
        $region56: #{tpu_custom_call.1} parent=47 // pred_fallthru
          _
        // Predicated region
        $region57: #{tpu_custom_call.1} parent=47 // pred_check
          %p309 = pneg %p90
        $region58: #{tpu_custom_call.1} parent=47 // pred_check_branch
          %311 = sbr.rel (%p309) target = $region60
        $region59: #{tpu_custom_call.1} parent=47 // pred_region
          %312 = dma.done [#allocation7], 8192
        $region60: #{tpu_custom_call.1} parent=47 // pred_fallthru
          _
        // Predicated region
        $region61: #{tpu_custom_call.1} parent=47 // pred_check
          %p313 = pneg %p132
        $region62: #{tpu_custom_call.1} parent=47 // pred_check_branch
          %315 = sbr.rel (%p313) target = $region64
        $region63: #{tpu_custom_call.1} parent=47 // pred_region
          %316 = dma.done [#allocation10], 1024
        $region64: #{tpu_custom_call.1} parent=47 // pred_fallthru
          _
        %s317 = sand.u32 %s35, 1
        %s318 = scalar_lea.sflag [#allocation4], %s317
        %s319 = sand.u32 %s35, 1
        %s320 = smul.addr %s319, 256
        %s321 = scalar_lea.vmem [#allocation3], %s320
        %p322 = pneg %p48
        %p323 = pneg %p45
        %p324 = pneg %p69
        %p325 = pneg %p66
        %p326 = pneg %p90
        %p327 = pneg %p87
        %p328 = pneg %p111
        %p329 = pneg %p108
        %p330 = pneg %p132
        %p331 = pneg %p129
        %p332 = pneg %p153
        %p333 = pneg %p150
        %p334 = pneg %p174
        %p335 = pneg %p171
        %p336 = pneg %p200
        %p337 = pneg %p197
        %s338 = sand.u32 %s187, 1
        %s339 = scalar_lea.sflag [#allocation5], %s338
        %s340 = sand.u32 %s187, 1
        %s341 = smul.addr %s340, 64
        %s342 = scalar_lea.vmem [#allocation11], %s341
        %s343 = smul.u32 8, %s27
        %s344 = smul.u32 8, %s27
        %v346 = vld [vmem:[%s300] sm:$0xff]
        %v347 = vld [vmem:[%s300 + $0x8] sm:$0xff]
        %v348 = vld [vmem:[%s300 + $0x10] sm:$0xff]
        %v349 = vld [vmem:[%s300 + $0x18] sm:$0xff]
        %v350 = vld [vmem:[%s300 + $0x20] sm:$0xff]
        %v351 = vld [vmem:[%s300 + $0x28] sm:$0xff]
        %v352 = vld [vmem:[%s300 + $0x30] sm:$0xff]
        %v353 = vld [vmem:[%s300 + $0x38] sm:$0xff]
        %v354 = vld [vmem:[%s300 + $0x40] sm:$0xff]
        %v355 = vld [vmem:[%s300 + $0x48] sm:$0xff]
        %v356 = vld [vmem:[%s300 + $0x50] sm:$0xff]
        %v357 = vld [vmem:[%s300 + $0x58] sm:$0xff]
        %v358 = vld [vmem:[%s300 + $0x60] sm:$0xff]
        %v359 = vld [vmem:[%s300 + $0x68] sm:$0xff]
        %v360 = vld [vmem:[%s300 + $0x70] sm:$0xff]
        %v361 = vld [vmem:[%s300 + $0x78] sm:$0xff]
        %v362 = vld [vmem:[%s300 + $0x80] sm:$0xff]
        %v363 = vld [vmem:[%s300 + $0x88] sm:$0xff]
        %v364 = vld [vmem:[%s300 + $0x90] sm:$0xff]
        %v365 = vld [vmem:[%s300 + $0x98] sm:$0xff]
        %v366 = vld [vmem:[%s300 + $0xa0] sm:$0xff]
        %v367 = vld [vmem:[%s300 + $0xa8] sm:$0xff]
        %v368 = vld [vmem:[%s300 + $0xb0] sm:$0xff]
        %v369 = vld [vmem:[%s300 + $0xb8] sm:$0xff]
        %v370 = vld [vmem:[%s300 + $0xc0] sm:$0xff]
        %v371 = vld [vmem:[%s300 + $0xc8] sm:$0xff]
        %v372 = vld [vmem:[%s300 + $0xd0] sm:$0xff]
        %v373 = vld [vmem:[%s300 + $0xd8] sm:$0xff]
        %v374 = vld [vmem:[%s300 + $0xe0] sm:$0xff]
        %v375 = vld [vmem:[%s300 + $0xe8] sm:$0xff]
        %v376 = vld [vmem:[%s300 + $0xf0] sm:$0xff]
        %v377 = vld [vmem:[%s300 + $0xf8] sm:$0xff]
        %v378 = vld [vmem:[#allocation8] sm:$0xf]
        %v379 = vld [vmem:[#allocation8 + $0x4] sm:$0xf]
        %v380 = vld [vmem:[#allocation8 + $0x8] sm:$0xf]
        %v381 = vld [vmem:[#allocation8 + $0xc] sm:$0xf]
        %v382 = vld [vmem:[#allocation8 + $0x10] sm:$0xf]
        %v383 = vld [vmem:[#allocation8 + $0x14] sm:$0xf]
        %v384 = vld [vmem:[#allocation8 + $0x18] sm:$0xf]
        %v385 = vld [vmem:[#allocation8 + $0x1c] sm:$0xf]
        %v386 = vld [vmem:[#allocation8 + $0x20] sm:$0xf]
        %v387 = vld [vmem:[#allocation8 + $0x24] sm:$0xf]
        %v388 = vld [vmem:[#allocation8 + $0x28] sm:$0xf]
        %v389 = vld [vmem:[#allocation8 + $0x2c] sm:$0xf]
        %v390 = vld [vmem:[#allocation8 + $0x30] sm:$0xf]
        %v391 = vld [vmem:[#allocation8 + $0x34] sm:$0xf]
        %v392 = vld [vmem:[#allocation8 + $0x38] sm:$0xf]
        %v393 = vld [vmem:[#allocation8 + $0x3c] sm:$0xf]
        %v394 = vld [vmem:[#allocation8 + $0x40] sm:$0xf]
        %v395 = vld [vmem:[#allocation8 + $0x44] sm:$0xf]
        %v396 = vld [vmem:[#allocation8 + $0x48] sm:$0xf]
        %v397 = vld [vmem:[#allocation8 + $0x4c] sm:$0xf]
        %v398 = vld [vmem:[#allocation8 + $0x50] sm:$0xf]
        %v399 = vld [vmem:[#allocation8 + $0x54] sm:$0xf]
        %v400 = vld [vmem:[#allocation8 + $0x58] sm:$0xf]
        %v401 = vld [vmem:[#allocation8 + $0x5c] sm:$0xf]
        %v402 = vld [vmem:[#allocation8 + $0x60] sm:$0xf]
        %v403 = vld [vmem:[#allocation8 + $0x64] sm:$0xf]
        %v404 = vld [vmem:[#allocation8 + $0x68] sm:$0xf]
        %v405 = vld [vmem:[#allocation8 + $0x6c] sm:$0xf]
        %v406 = vld [vmem:[#allocation8 + $0x70] sm:$0xf]
        %v407 = vld [vmem:[#allocation8 + $0x74] sm:$0xf]
        %v408 = vld [vmem:[#allocation8 + $0x78] sm:$0xf]
        %v409 = vld [vmem:[#allocation8 + $0x7c] sm:$0xf]
        %v410 = vld [vmem:[#allocation8 + $0x80] sm:$0xf]
        %v411 = vld [vmem:[#allocation8 + $0x84] sm:$0xf]
        %v412 = vld [vmem:[#allocation8 + $0x88] sm:$0xf]
        %v413 = vld [vmem:[#allocation8 + $0x8c] sm:$0xf]
        %v414 = vld [vmem:[#allocation8 + $0x90] sm:$0xf]
        %v415 = vld [vmem:[#allocation8 + $0x94] sm:$0xf]
        %v416 = vld [vmem:[#allocation8 + $0x98] sm:$0xf]
        %v417 = vld [vmem:[#allocation8 + $0x9c] sm:$0xf]
        %v418 = vld [vmem:[#allocation8 + $0xa0] sm:$0xf]
        %v419 = vld [vmem:[#allocation8 + $0xa4] sm:$0xf]
        %v420 = vld [vmem:[#allocation8 + $0xa8] sm:$0xf]
        %v421 = vld [vmem:[#allocation8 + $0xac] sm:$0xf]
        %v422 = vld [vmem:[#allocation8 + $0xb0] sm:$0xf]
        %v423 = vld [vmem:[#allocation8 + $0xb4] sm:$0xf]
        %v424 = vld [vmem:[#allocation8 + $0xb8] sm:$0xf]
        %v425 = vld [vmem:[#allocation8 + $0xbc] sm:$0xf]
        %v426 = vld [vmem:[#allocation8 + $0xc0] sm:$0xf]
        %v427 = vld [vmem:[#allocation8 + $0xc4] sm:$0xf]
        %v428 = vld [vmem:[#allocation8 + $0xc8] sm:$0xf]
        %v429 = vld [vmem:[#allocation8 + $0xcc] sm:$0xf]
        %v430 = vld [vmem:[#allocation8 + $0xd0] sm:$0xf]
        %v431 = vld [vmem:[#allocation8 + $0xd4] sm:$0xf]
        %v432 = vld [vmem:[#allocation8 + $0xd8] sm:$0xf]
        %v433 = vld [vmem:[#allocation8 + $0xdc] sm:$0xf]
        %v434 = vld [vmem:[#allocation8 + $0xe0] sm:$0xf]
        %v435 = vld [vmem:[#allocation8 + $0xe4] sm:$0xf]
        %v436 = vld [vmem:[#allocation8 + $0xe8] sm:$0xf]
        %v437 = vld [vmem:[#allocation8 + $0xec] sm:$0xf]
        %v438 = vld [vmem:[#allocation8 + $0xf0] sm:$0xf]
        %v439 = vld [vmem:[#allocation8 + $0xf4] sm:$0xf]
        %v440 = vld [vmem:[#allocation8 + $0xf8] sm:$0xf]
        %v441 = vld [vmem:[#allocation8 + $0xfc] sm:$0xf]
        %v442 = vld [vmem:[#allocation8 + $0x100] sm:$0xf]
        %v443 = vld [vmem:[#allocation8 + $0x104] sm:$0xf]
        %v444 = vld [vmem:[#allocation8 + $0x108] sm:$0xf]
        %v445 = vld [vmem:[#allocation8 + $0x10c] sm:$0xf]
        %v446 = vld [vmem:[#allocation8 + $0x110] sm:$0xf]
        %v447 = vld [vmem:[#allocation8 + $0x114] sm:$0xf]
        %v448 = vld [vmem:[#allocation8 + $0x118] sm:$0xf]
        %v449 = vld [vmem:[#allocation8 + $0x11c] sm:$0xf]
        %v450 = vld [vmem:[#allocation8 + $0x120] sm:$0xf]
        %v451 = vld [vmem:[#allocation8 + $0x124] sm:$0xf]
        %v452 = vld [vmem:[#allocation8 + $0x128] sm:$0xf]
        %v453 = vld [vmem:[#allocation8 + $0x12c] sm:$0xf]
        %v454 = vld [vmem:[#allocation8 + $0x130] sm:$0xf]
        %v455 = vld [vmem:[#allocation8 + $0x134] sm:$0xf]
        %v456 = vld [vmem:[#allocation8 + $0x138] sm:$0xf]
        %v457 = vld [vmem:[#allocation8 + $0x13c] sm:$0xf]
        %v458 = vld [vmem:[#allocation8 + $0x140] sm:$0xf]
        %v459 = vld [vmem:[#allocation8 + $0x144] sm:$0xf]
        %v460 = vld [vmem:[#allocation8 + $0x148] sm:$0xf]
        %v461 = vld [vmem:[#allocation8 + $0x14c] sm:$0xf]
        %v462 = vld [vmem:[#allocation8 + $0x150] sm:$0xf]
        %v463 = vld [vmem:[#allocation8 + $0x154] sm:$0xf]
        %v464 = vld [vmem:[#allocation8 + $0x158] sm:$0xf]
        %v465 = vld [vmem:[#allocation8 + $0x15c] sm:$0xf]
        %v466 = vld [vmem:[#allocation8 + $0x160] sm:$0xf]
        %v467 = vld [vmem:[#allocation8 + $0x164] sm:$0xf]
        %v468 = vld [vmem:[#allocation8 + $0x168] sm:$0xf]
        %v469 = vld [vmem:[#allocation8 + $0x16c] sm:$0xf]
        %v470 = vld [vmem:[#allocation8 + $0x170] sm:$0xf]
        %v471 = vld [vmem:[#allocation8 + $0x174] sm:$0xf]
        %v472 = vld [vmem:[#allocation8 + $0x178] sm:$0xf]
        %v473 = vld [vmem:[#allocation8 + $0x17c] sm:$0xf]
        %v474 = vld [vmem:[#allocation8 + $0x180] sm:$0xf]
        %v475 = vld [vmem:[#allocation8 + $0x184] sm:$0xf]
        %v476 = vld [vmem:[#allocation8 + $0x188] sm:$0xf]
        %v477 = vld [vmem:[#allocation8 + $0x18c] sm:$0xf]
        %v478 = vld [vmem:[#allocation8 + $0x190] sm:$0xf]
        %v479 = vld [vmem:[#allocation8 + $0x194] sm:$0xf]
        %v480 = vld [vmem:[#allocation8 + $0x198] sm:$0xf]
        %v481 = vld [vmem:[#allocation8 + $0x19c] sm:$0xf]
        %v482 = vld [vmem:[#allocation8 + $0x1a0] sm:$0xf]
        %v483 = vld [vmem:[#allocation8 + $0x1a4] sm:$0xf]
        %v484 = vld [vmem:[#allocation8 + $0x1a8] sm:$0xf]
        %v485 = vld [vmem:[#allocation8 + $0x1ac] sm:$0xf]
        %v486 = vld [vmem:[#allocation8 + $0x1b0] sm:$0xf]
        %v487 = vld [vmem:[#allocation8 + $0x1b4] sm:$0xf]
        %v488 = vld [vmem:[#allocation8 + $0x1b8] sm:$0xf]
        %v489 = vld [vmem:[#allocation8 + $0x1bc] sm:$0xf]
        %v490 = vld [vmem:[#allocation8 + $0x1c0] sm:$0xf]
        %v491 = vld [vmem:[#allocation8 + $0x1c4] sm:$0xf]
        %v492 = vld [vmem:[#allocation8 + $0x1c8] sm:$0xf]
        %v493 = vld [vmem:[#allocation8 + $0x1cc] sm:$0xf]
        %v494 = vld [vmem:[#allocation8 + $0x1d0] sm:$0xf]
        %v495 = vld [vmem:[#allocation8 + $0x1d4] sm:$0xf]
        %v496 = vld [vmem:[#allocation8 + $0x1d8] sm:$0xf]
        %v497 = vld [vmem:[#allocation8 + $0x1dc] sm:$0xf]
        %v498 = vld [vmem:[#allocation8 + $0x1e0] sm:$0xf]
        %v499 = vld [vmem:[#allocation8 + $0x1e4] sm:$0xf]
        %v500 = vld [vmem:[#allocation8 + $0x1e8] sm:$0xf]
        %v501 = vld [vmem:[#allocation8 + $0x1ec] sm:$0xf]
        %v502 = vld [vmem:[#allocation8 + $0x1f0] sm:$0xf]
        %v503 = vld [vmem:[#allocation8 + $0x1f4] sm:$0xf]
        %v504 = vld [vmem:[#allocation8 + $0x1f8] sm:$0xf]
        %v505 = vld [vmem:[#allocation8 + $0x1fc] sm:$0xf]
        %v506 = vld [vmem:[%s3] sm:$0x1]
        %v508 = vlaneseq
        %v509 = vshrl.u32 %v508, 7
        %v510 = vsub.s32 0, %v509
        %v511 = vrot.slane %v506, %v510
        %v545 = vunpack.c.l.b16 %v346
        %v546 = vunpack.c.h.b16 %v346
        %v547 = vunpack.c.l.b16 %v347
        %v548 = vunpack.c.h.b16 %v347
        %v549 = vunpack.c.l.b16 %v348
        %v550 = vunpack.c.h.b16 %v348
        %v551 = vunpack.c.l.b16 %v349
        %v552 = vunpack.c.h.b16 %v349
        %v553 = vunpack.c.l.b16 %v350
        %v554 = vunpack.c.h.b16 %v350
        %v555 = vunpack.c.l.b16 %v351
        %v556 = vunpack.c.h.b16 %v351
        %v557 = vunpack.c.l.b16 %v352
        %v558 = vunpack.c.h.b16 %v352
        %v559 = vunpack.c.l.b16 %v353
        %v560 = vunpack.c.h.b16 %v353
        %v561 = vunpack.c.l.b16 %v354
        %v562 = vunpack.c.h.b16 %v354
        %v563 = vunpack.c.l.b16 %v355
        %v564 = vunpack.c.h.b16 %v355
        %v565 = vunpack.c.l.b16 %v356
        %v566 = vunpack.c.h.b16 %v356
        %v567 = vunpack.c.l.b16 %v357
        %v568 = vunpack.c.h.b16 %v357
        %v569 = vunpack.c.l.b16 %v358
        %v570 = vunpack.c.h.b16 %v358
        %v571 = vunpack.c.l.b16 %v359
        %v572 = vunpack.c.h.b16 %v359
        %v573 = vunpack.c.l.b16 %v360
        %v574 = vunpack.c.h.b16 %v360
        %v575 = vunpack.c.l.b16 %v361
        %v576 = vunpack.c.h.b16 %v361
        %v577 = vunpack.c.l.b16 %v362
        %v578 = vunpack.c.h.b16 %v362
        %v579 = vunpack.c.l.b16 %v363
        %v580 = vunpack.c.h.b16 %v363
        %v581 = vunpack.c.l.b16 %v364
        %v582 = vunpack.c.h.b16 %v364
        %v583 = vunpack.c.l.b16 %v365
        %v584 = vunpack.c.h.b16 %v365
        %v585 = vunpack.c.l.b16 %v366
        %v586 = vunpack.c.h.b16 %v366
        %v587 = vunpack.c.l.b16 %v367
        %v588 = vunpack.c.h.b16 %v367
        %v589 = vunpack.c.l.b16 %v368
        %v590 = vunpack.c.h.b16 %v368
        %v591 = vunpack.c.l.b16 %v369
        %v592 = vunpack.c.h.b16 %v369
        %v593 = vunpack.c.l.b16 %v370
        %v594 = vunpack.c.h.b16 %v370
        %v595 = vunpack.c.l.b16 %v371
        %v596 = vunpack.c.h.b16 %v371
        %v597 = vunpack.c.l.b16 %v372
        %v598 = vunpack.c.h.b16 %v372
        %v599 = vunpack.c.l.b16 %v373
        %v600 = vunpack.c.h.b16 %v373
        %v601 = vunpack.c.l.b16 %v374
        %v602 = vunpack.c.h.b16 %v374
        %v603 = vunpack.c.l.b16 %v375
        %v604 = vunpack.c.h.b16 %v375
        %v605 = vunpack.c.l.b16 %v376
        %v606 = vunpack.c.h.b16 %v376
        %v607 = vunpack.c.l.b16 %v377
        %v608 = vunpack.c.h.b16 %v377
        %v609 = vpack.c.b16 %v553, %v545
        %v610 = vpack.c.b16 %v554, %v546
        %v611 = vpack.c.b16 %v555, %v547
        %v612 = vpack.c.b16 %v556, %v548
        %v613 = vpack.c.b16 %v557, %v549
        %v614 = vpack.c.b16 %v558, %v550
        %v615 = vpack.c.b16 %v559, %v551
        %v616 = vpack.c.b16 %v560, %v552
        %v617 = vpack.c.b16 %v569, %v561
        %v618 = vpack.c.b16 %v570, %v562
        %v619 = vpack.c.b16 %v571, %v563
        %v620 = vpack.c.b16 %v572, %v564
        %v621 = vpack.c.b16 %v573, %v565
        %v622 = vpack.c.b16 %v574, %v566
        %v623 = vpack.c.b16 %v575, %v567
        %v624 = vpack.c.b16 %v576, %v568
        %v625 = vpack.c.b16 %v585, %v577
        %v626 = vpack.c.b16 %v586, %v578
        %v627 = vpack.c.b16 %v587, %v579
        %v628 = vpack.c.b16 %v588, %v580
        %v629 = vpack.c.b16 %v589, %v581
        %v630 = vpack.c.b16 %v590, %v582
        %v631 = vpack.c.b16 %v591, %v583
        %v632 = vpack.c.b16 %v592, %v584
        %v633 = vpack.c.b16 %v601, %v593
        %v634 = vpack.c.b16 %v602, %v594
        %v635 = vpack.c.b16 %v603, %v595
        %v636 = vpack.c.b16 %v604, %v596
        %v637 = vpack.c.b16 %v605, %v597
        %v638 = vpack.c.b16 %v606, %v598
        %v639 = vpack.c.b16 %v607, %v599
        %v640 = vpack.c.b16 %v608, %v600
        %v801 = vunpack.c.l.b16 %v378
        %v802 = vunpack.c.l.b16 %v379
        %v803 = vunpack.c.l.b16 %v380
        %v804 = vunpack.c.l.b16 %v381
        %v805 = vunpack.c.l.b16 %v382
        %v806 = vunpack.c.l.b16 %v383
        %v807 = vunpack.c.l.b16 %v384
        %v808 = vunpack.c.l.b16 %v385
        %v809 = vunpack.c.l.b16 %v386
        %v810 = vunpack.c.l.b16 %v387
        %v811 = vunpack.c.l.b16 %v388
        %v812 = vunpack.c.l.b16 %v389
        %v813 = vunpack.c.l.b16 %v390
        %v814 = vunpack.c.l.b16 %v391
        %v815 = vunpack.c.l.b16 %v392
        %v816 = vunpack.c.l.b16 %v393
        %v817 = vunpack.c.l.b16 %v394
        %v818 = vunpack.c.l.b16 %v395
        %v819 = vunpack.c.l.b16 %v396
        %v820 = vunpack.c.l.b16 %v397
        %v821 = vunpack.c.l.b16 %v398
        %v822 = vunpack.c.l.b16 %v399
        %v823 = vunpack.c.l.b16 %v400
        %v824 = vunpack.c.l.b16 %v401
        %v825 = vunpack.c.l.b16 %v402
        %v826 = vunpack.c.l.b16 %v403
        %v827 = vunpack.c.l.b16 %v404
        %v828 = vunpack.c.l.b16 %v405
        %v829 = vunpack.c.l.b16 %v406
        %v830 = vunpack.c.l.b16 %v407
        %v831 = vunpack.c.l.b16 %v408
        %v832 = vunpack.c.l.b16 %v409
        %v833 = vunpack.c.l.b16 %v410
        %v834 = vunpack.c.l.b16 %v411
        %v835 = vunpack.c.l.b16 %v412
        %v836 = vunpack.c.l.b16 %v413
        %v837 = vunpack.c.l.b16 %v414
        %v838 = vunpack.c.l.b16 %v415
        %v839 = vunpack.c.l.b16 %v416
        %v840 = vunpack.c.l.b16 %v417
        %v841 = vunpack.c.l.b16 %v418
        %v842 = vunpack.c.l.b16 %v419
        %v843 = vunpack.c.l.b16 %v420
        %v844 = vunpack.c.l.b16 %v421
        %v845 = vunpack.c.l.b16 %v422
        %v846 = vunpack.c.l.b16 %v423
        %v847 = vunpack.c.l.b16 %v424
        %v848 = vunpack.c.l.b16 %v425
        %v849 = vunpack.c.l.b16 %v426
        %v850 = vunpack.c.l.b16 %v427
        %v851 = vunpack.c.l.b16 %v428
        %v852 = vunpack.c.l.b16 %v429
        %v853 = vunpack.c.l.b16 %v430
        %v854 = vunpack.c.l.b16 %v431
        %v855 = vunpack.c.l.b16 %v432
        %v856 = vunpack.c.l.b16 %v433
        %v857 = vunpack.c.l.b16 %v434
        %v858 = vunpack.c.l.b16 %v435
        %v859 = vunpack.c.l.b16 %v436
        %v860 = vunpack.c.l.b16 %v437
        %v861 = vunpack.c.l.b16 %v438
        %v862 = vunpack.c.l.b16 %v439
        %v863 = vunpack.c.l.b16 %v440
        %v864 = vunpack.c.l.b16 %v441
        %v865 = vunpack.c.l.b16 %v442
        %v866 = vunpack.c.l.b16 %v443
        %v867 = vunpack.c.l.b16 %v444
        %v868 = vunpack.c.l.b16 %v445
        %v869 = vunpack.c.l.b16 %v446
        %v870 = vunpack.c.l.b16 %v447
        %v871 = vunpack.c.l.b16 %v448
        %v872 = vunpack.c.l.b16 %v449
        %v873 = vunpack.c.l.b16 %v450
        %v874 = vunpack.c.l.b16 %v451
        %v875 = vunpack.c.l.b16 %v452
        %v876 = vunpack.c.l.b16 %v453
        %v877 = vunpack.c.l.b16 %v454
        %v878 = vunpack.c.l.b16 %v455
        %v879 = vunpack.c.l.b16 %v456
        %v880 = vunpack.c.l.b16 %v457
        %v881 = vunpack.c.l.b16 %v458
        %v882 = vunpack.c.l.b16 %v459
        %v883 = vunpack.c.l.b16 %v460
        %v884 = vunpack.c.l.b16 %v461
        %v885 = vunpack.c.l.b16 %v462
        %v886 = vunpack.c.l.b16 %v463
        %v887 = vunpack.c.l.b16 %v464
        %v888 = vunpack.c.l.b16 %v465
        %v889 = vunpack.c.l.b16 %v466
        %v890 = vunpack.c.l.b16 %v467
        %v891 = vunpack.c.l.b16 %v468
        %v892 = vunpack.c.l.b16 %v469
        %v893 = vunpack.c.l.b16 %v470
        %v894 = vunpack.c.l.b16 %v471
        %v895 = vunpack.c.l.b16 %v472
        %v896 = vunpack.c.l.b16 %v473
        %v897 = vunpack.c.l.b16 %v474
        %v898 = vunpack.c.l.b16 %v475
        %v899 = vunpack.c.l.b16 %v476
        %v900 = vunpack.c.l.b16 %v477
        %v901 = vunpack.c.l.b16 %v478
        %v902 = vunpack.c.l.b16 %v479
        %v903 = vunpack.c.l.b16 %v480
        %v904 = vunpack.c.l.b16 %v481
        %v905 = vunpack.c.l.b16 %v482
        %v906 = vunpack.c.l.b16 %v483
        %v907 = vunpack.c.l.b16 %v484
        %v908 = vunpack.c.l.b16 %v485
        %v909 = vunpack.c.l.b16 %v486
        %v910 = vunpack.c.l.b16 %v487
        %v911 = vunpack.c.l.b16 %v488
        %v912 = vunpack.c.l.b16 %v489
        %v913 = vunpack.c.l.b16 %v490
        %v914 = vunpack.c.l.b16 %v491
        %v915 = vunpack.c.l.b16 %v492
        %v916 = vunpack.c.l.b16 %v493
        %v917 = vunpack.c.l.b16 %v494
        %v918 = vunpack.c.l.b16 %v495
        %v919 = vunpack.c.l.b16 %v496
        %v920 = vunpack.c.l.b16 %v497
        %v921 = vunpack.c.l.b16 %v498
        %v922 = vunpack.c.l.b16 %v499
        %v923 = vunpack.c.l.b16 %v500
        %v924 = vunpack.c.l.b16 %v501
        %v925 = vunpack.c.l.b16 %v502
        %v926 = vunpack.c.l.b16 %v503
        %v927 = vunpack.c.l.b16 %v504
        %v928 = vunpack.c.l.b16 %v505
        %v929 = vpack.c.b16 %v802, %v801
        %v930 = vpack.c.b16 %v804, %v803
        %v931 = vpack.c.b16 %v806, %v805
        %v932 = vpack.c.b16 %v808, %v807
        %v933 = vpack.c.b16 %v810, %v809
        %v934 = vpack.c.b16 %v812, %v811
        %v935 = vpack.c.b16 %v814, %v813
        %v936 = vpack.c.b16 %v816, %v815
        %v937 = vpack.c.b16 %v818, %v817
        %v938 = vpack.c.b16 %v820, %v819
        %v939 = vpack.c.b16 %v822, %v821
        %v940 = vpack.c.b16 %v824, %v823
        %v941 = vpack.c.b16 %v826, %v825
        %v942 = vpack.c.b16 %v828, %v827
        %v943 = vpack.c.b16 %v830, %v829
        %v944 = vpack.c.b16 %v832, %v831
        %v945 = vpack.c.b16 %v834, %v833
        %v946 = vpack.c.b16 %v836, %v835
        %v947 = vpack.c.b16 %v838, %v837
        %v948 = vpack.c.b16 %v840, %v839
        %v949 = vpack.c.b16 %v842, %v841
        %v950 = vpack.c.b16 %v844, %v843
        %v951 = vpack.c.b16 %v846, %v845
        %v952 = vpack.c.b16 %v848, %v847
        %v953 = vpack.c.b16 %v850, %v849
        %v954 = vpack.c.b16 %v852, %v851
        %v955 = vpack.c.b16 %v854, %v853
        %v956 = vpack.c.b16 %v856, %v855
        %v957 = vpack.c.b16 %v858, %v857
        %v958 = vpack.c.b16 %v860, %v859
        %v959 = vpack.c.b16 %v862, %v861
        %v960 = vpack.c.b16 %v864, %v863
        %v961 = vpack.c.b16 %v866, %v865
        %v962 = vpack.c.b16 %v868, %v867
        %v963 = vpack.c.b16 %v870, %v869
        %v964 = vpack.c.b16 %v872, %v871
        %v965 = vpack.c.b16 %v874, %v873
        %v966 = vpack.c.b16 %v876, %v875
        %v967 = vpack.c.b16 %v878, %v877
        %v968 = vpack.c.b16 %v880, %v879
        %v969 = vpack.c.b16 %v882, %v881
        %v970 = vpack.c.b16 %v884, %v883
        %v971 = vpack.c.b16 %v886, %v885
        %v972 = vpack.c.b16 %v888, %v887
        %v973 = vpack.c.b16 %v890, %v889
        %v974 = vpack.c.b16 %v892, %v891
        %v975 = vpack.c.b16 %v894, %v893
        %v976 = vpack.c.b16 %v896, %v895
        %v977 = vpack.c.b16 %v898, %v897
        %v978 = vpack.c.b16 %v900, %v899
        %v979 = vpack.c.b16 %v902, %v901
        %v980 = vpack.c.b16 %v904, %v903
        %v981 = vpack.c.b16 %v906, %v905
        %v982 = vpack.c.b16 %v908, %v907
        %v983 = vpack.c.b16 %v910, %v909
        %v984 = vpack.c.b16 %v912, %v911
        %v985 = vpack.c.b16 %v914, %v913
        %v986 = vpack.c.b16 %v916, %v915
        %v987 = vpack.c.b16 %v918, %v917
        %v988 = vpack.c.b16 %v920, %v919
        %v989 = vpack.c.b16 %v922, %v921
        %v990 = vpack.c.b16 %v924, %v923
        %v991 = vpack.c.b16 %v926, %v925
        %v992 = vpack.c.b16 %v928, %v927
        %1057 = vmatprep.subr.bf16.mxu0 0
        %1058 = vmatpush1.bf16.msra.mxu0 %v929
        %1059 = vmatprep.subr.bf16.mxu0 0
        %1060 = vmatpush1.bf16.msra.mxu0 %v930
        %1061 = vmatprep.subr.bf16.mxu0 0
        %1062 = vmatpush1.bf16.msra.mxu0 %v931
        %1063 = vmatprep.subr.bf16.mxu0 0
        %1064 = vmatpush1.bf16.msra.mxu0 %v932
        %1065 = vmatprep.subr.bf16.mxu0 0
        %1066 = vmatpush1.bf16.msra.mxu0 %v933
        %1067 = vmatprep.subr.bf16.mxu0 0
        %1068 = vmatpush1.bf16.msra.mxu0 %v934
        %1069 = vmatprep.subr.bf16.mxu0 0
        %1070 = vmatpush1.bf16.msra.mxu0 %v935
        %1071 = vmatprep.subr.bf16.mxu0 0
        %1072 = vmatpush1.bf16.msra.mxu0 %v936
        %1073 = vmatprep.subr.bf16.mxu0 0
        %1074 = vmatpush1.bf16.msra.mxu0 %v937
        %1075 = vmatprep.subr.bf16.mxu0 0
        %1076 = vmatpush1.bf16.msra.mxu0 %v938
        %1077 = vmatprep.subr.bf16.mxu0 0
        %1078 = vmatpush1.bf16.msra.mxu0 %v939
        %1079 = vmatprep.subr.bf16.mxu0 0
        %1080 = vmatpush1.bf16.msra.mxu0 %v940
        %1081 = vmatprep.subr.bf16.mxu0 0
        %1082 = vmatpush1.bf16.msra.mxu0 %v941
        %1083 = vmatprep.subr.bf16.mxu0 0
        %1084 = vmatpush1.bf16.msra.mxu0 %v942
        %1085 = vmatprep.subr.bf16.mxu0 0
        %1086 = vmatpush1.bf16.msra.mxu0 %v943
        %1087 = vmatprep.subr.bf16.mxu0 0
        %1088 = vmatpush1.bf16.msra.mxu0 %v944
        %1089 = vmatprep.mubr.bf16.mxu0 %v610
        %1090 = vmatmul.mubr.bf16.gmra.mrb[0].mxu0 %v609
        %v1091 = vpop.f32.mrb[0].mxu0
        %v1092 = vadd.f32 %v511, %v1091
        %v1093 = vpop.f32.mrb[0].mxu0
        %v1094 = vpop.f32.mrb[0].mxu0
        %v1095 = vadd.f32 %v511, %v1094
        %v1096 = vpop.f32.mrb[0].mxu0
        %1097 = vmatprep.mubr.bf16.mxu0 %v618
        %1098 = vmatmul.mubr.bf16.gmra.mrb[0].mxu0 %v617
        %v1099 = vpop.f32.mrb[0].mxu0
        %v1100 = vadd.f32 %v511, %v1099
        %v1101 = vpop.f32.mrb[0].mxu0
        %v1102 = vpop.f32.mrb[0].mxu0
        %v1103 = vadd.f32 %v511, %v1102
        %v1104 = vpop.f32.mrb[0].mxu0
        %1105 = vmatprep.mubr.bf16.mxu0 %v626
        %1106 = vmatmul.mubr.bf16.gmra.mrb[0].mxu0 %v625
        %v1107 = vpop.f32.mrb[0].mxu0
        %v1108 = vadd.f32 %v511, %v1107
        %v1109 = vpop.f32.mrb[0].mxu0
        %v1110 = vpop.f32.mrb[0].mxu0
        %v1111 = vadd.f32 %v511, %v1110
        %v1112 = vpop.f32.mrb[0].mxu0
        %1113 = vmatprep.mubr.bf16.mxu0 %v634
        %1114 = vmatmul.mubr.bf16.gmra.mrb[0].mxu0 %v633
        %v1115 = vpop.f32.mrb[0].mxu0
        %v1116 = vadd.f32 %v511, %v1115
        %v1117 = vpop.f32.mrb[0].mxu0
        %v1118 = vpop.f32.mrb[0].mxu0
        %v1119 = vadd.f32 %v511, %v1118
        %v1120 = vpop.f32.mrb[0].mxu0
        %1121 = vdwg.mxu0
        %1122 = vmatprep.subr.bf16.mxu0 0
        %1123 = vmatpush1.bf16.msra.mxu0 %v945
        %1124 = vmatprep.subr.bf16.mxu0 0
        %1125 = vmatpush1.bf16.msra.mxu0 %v946
        %1126 = vmatprep.subr.bf16.mxu0 0
        %1127 = vmatpush1.bf16.msra.mxu0 %v947
        %1128 = vmatprep.subr.bf16.mxu0 0
        %1129 = vmatpush1.bf16.msra.mxu0 %v948
        %1130 = vmatprep.subr.bf16.mxu0 0
        %1131 = vmatpush1.bf16.msra.mxu0 %v949
        %1132 = vmatprep.subr.bf16.mxu0 0
        %1133 = vmatpush1.bf16.msra.mxu0 %v950
        %1134 = vmatprep.subr.bf16.mxu0 0
        %1135 = vmatpush1.bf16.msra.mxu0 %v951
        %1136 = vmatprep.subr.bf16.mxu0 0
        %1137 = vmatpush1.bf16.msra.mxu0 %v952
        %1138 = vmatprep.subr.bf16.mxu0 0
        %1139 = vmatpush1.bf16.msra.mxu0 %v953
        %1140 = vmatprep.subr.bf16.mxu0 0
        %1141 = vmatpush1.bf16.msra.mxu0 %v954
        %1142 = vmatprep.subr.bf16.mxu0 0
        %1143 = vmatpush1.bf16.msra.mxu0 %v955
        %1144 = vmatprep.subr.bf16.mxu0 0
        %1145 = vmatpush1.bf16.msra.mxu0 %v956
        %1146 = vmatprep.subr.bf16.mxu0 0
        %1147 = vmatpush1.bf16.msra.mxu0 %v957
        %1148 = vmatprep.subr.bf16.mxu0 0
        %1149 = vmatpush1.bf16.msra.mxu0 %v958
        %1150 = vmatprep.subr.bf16.mxu0 0
        %1151 = vmatpush1.bf16.msra.mxu0 %v959
        %1152 = vmatprep.subr.bf16.mxu0 0
        %1153 = vmatpush1.bf16.msra.mxu0 %v960
        %1154 = vmatprep.mubr.bf16.mxu0 %v612
        %1155 = vmatmul.mubr.bf16.gmra.mrb[0].mxu0 %v611
        %v1156 = vpop.f32.mrb[0].mxu0
        %v1157 = vadd.f32 %v1092, %v1156
        %v1158 = vpop.f32.mrb[0].mxu0
        %v1159 = vpop.f32.mrb[0].mxu0
        %v1160 = vadd.f32 %v1095, %v1159
        %v1161 = vpop.f32.mrb[0].mxu0
        %1162 = vmatprep.mubr.bf16.mxu0 %v620
        %1163 = vmatmul.mubr.bf16.gmra.mrb[0].mxu0 %v619
        %v1164 = vpop.f32.mrb[0].mxu0
        %v1165 = vadd.f32 %v1100, %v1164
        %v1166 = vpop.f32.mrb[0].mxu0
        %v1167 = vpop.f32.mrb[0].mxu0
        %v1168 = vadd.f32 %v1103, %v1167
        %v1169 = vpop.f32.mrb[0].mxu0
        %1170 = vmatprep.mubr.bf16.mxu0 %v628
        %1171 = vmatmul.mubr.bf16.gmra.mrb[0].mxu0 %v627
        %v1172 = vpop.f32.mrb[0].mxu0
        %v1173 = vadd.f32 %v1108, %v1172
        %v1174 = vpop.f32.mrb[0].mxu0
        %v1175 = vpop.f32.mrb[0].mxu0
        %v1176 = vadd.f32 %v1111, %v1175
        %v1177 = vpop.f32.mrb[0].mxu0
        %1178 = vmatprep.mubr.bf16.mxu0 %v636
        %1179 = vmatmul.mubr.bf16.gmra.mrb[0].mxu0 %v635
        %v1180 = vpop.f32.mrb[0].mxu0
        %v1181 = vadd.f32 %v1116, %v1180
        %v1182 = vpop.f32.mrb[0].mxu0
        %v1183 = vpop.f32.mrb[0].mxu0
        %v1184 = vadd.f32 %v1119, %v1183
        %v1185 = vpop.f32.mrb[0].mxu0
        %1186 = vdwg.mxu0
        %1187 = vmatprep.subr.bf16.mxu0 0
        %1188 = vmatpush1.bf16.msra.mxu0 %v961
        %1189 = vmatprep.subr.bf16.mxu0 0
        %1190 = vmatpush1.bf16.msra.mxu0 %v962
        %1191 = vmatprep.subr.bf16.mxu0 0
        %1192 = vmatpush1.bf16.msra.mxu0 %v963
        %1193 = vmatprep.subr.bf16.mxu0 0
        %1194 = vmatpush1.bf16.msra.mxu0 %v964
        %1195 = vmatprep.subr.bf16.mxu0 0
        %1196 = vmatpush1.bf16.msra.mxu0 %v965
        %1197 = vmatprep.subr.bf16.mxu0 0
        %1198 = vmatpush1.bf16.msra.mxu0 %v966
        %1199 = vmatprep.subr.bf16.mxu0 0
        %1200 = vmatpush1.bf16.msra.mxu0 %v967
        %1201 = vmatprep.subr.bf16.mxu0 0
        %1202 = vmatpush1.bf16.msra.mxu0 %v968
        %1203 = vmatprep.subr.bf16.mxu0 0
        %1204 = vmatpush1.bf16.msra.mxu0 %v969
        %1205 = vmatprep.subr.bf16.mxu0 0
        %1206 = vmatpush1.bf16.msra.mxu0 %v970
        %1207 = vmatprep.subr.bf16.mxu0 0
        %1208 = vmatpush1.bf16.msra.mxu0 %v971
        %1209 = vmatprep.subr.bf16.mxu0 0
        %1210 = vmatpush1.bf16.msra.mxu0 %v972
        %1211 = vmatprep.subr.bf16.mxu0 0
        %1212 = vmatpush1.bf16.msra.mxu0 %v973
        %1213 = vmatprep.subr.bf16.mxu0 0
        %1214 = vmatpush1.bf16.msra.mxu0 %v974
        %1215 = vmatprep.subr.bf16.mxu0 0
        %1216 = vmatpush1.bf16.msra.mxu0 %v975
        %1217 = vmatprep.subr.bf16.mxu0 0
        %1218 = vmatpush1.bf16.msra.mxu0 %v976
        %1219 = vmatprep.mubr.bf16.mxu0 %v614
        %1220 = vmatmul.mubr.bf16.gmra.mrb[0].mxu0 %v613
        %v1221 = vpop.f32.mrb[0].mxu0
        %v1222 = vadd.f32 %v1157, %v1221
        %v1223 = vpop.f32.mrb[0].mxu0
        %v1224 = vpop.f32.mrb[0].mxu0
        %v1225 = vadd.f32 %v1160, %v1224
        %v1226 = vpop.f32.mrb[0].mxu0
        %1227 = vmatprep.mubr.bf16.mxu0 %v622
        %1228 = vmatmul.mubr.bf16.gmra.mrb[0].mxu0 %v621
        %v1229 = vpop.f32.mrb[0].mxu0
        %v1230 = vadd.f32 %v1165, %v1229
        %v1231 = vpop.f32.mrb[0].mxu0
        %v1232 = vpop.f32.mrb[0].mxu0
        %v1233 = vadd.f32 %v1168, %v1232
        %v1234 = vpop.f32.mrb[0].mxu0
        %1235 = vmatprep.mubr.bf16.mxu0 %v630
        %1236 = vmatmul.mubr.bf16.gmra.mrb[0].mxu0 %v629
        %v1237 = vpop.f32.mrb[0].mxu0
        %v1238 = vadd.f32 %v1173, %v1237
        %v1239 = vpop.f32.mrb[0].mxu0
        %v1240 = vpop.f32.mrb[0].mxu0
        %v1241 = vadd.f32 %v1176, %v1240
        %v1242 = vpop.f32.mrb[0].mxu0
        %1243 = vmatprep.mubr.bf16.mxu0 %v638
        %1244 = vmatmul.mubr.bf16.gmra.mrb[0].mxu0 %v637
        %v1245 = vpop.f32.mrb[0].mxu0
        %v1246 = vadd.f32 %v1181, %v1245
        %v1247 = vpop.f32.mrb[0].mxu0
        %v1248 = vpop.f32.mrb[0].mxu0
        %v1249 = vadd.f32 %v1184, %v1248
        %v1250 = vpop.f32.mrb[0].mxu0
        %1251 = vdwg.mxu0
        %1252 = vmatprep.subr.bf16.mxu0 0
        %1253 = vmatpush1.bf16.msra.mxu0 %v977
        %1254 = vmatprep.subr.bf16.mxu0 0
        %1255 = vmatpush1.bf16.msra.mxu0 %v978
        %1256 = vmatprep.subr.bf16.mxu0 0
        %1257 = vmatpush1.bf16.msra.mxu0 %v979
        %1258 = vmatprep.subr.bf16.mxu0 0
        %1259 = vmatpush1.bf16.msra.mxu0 %v980
        %1260 = vmatprep.subr.bf16.mxu0 0
        %1261 = vmatpush1.bf16.msra.mxu0 %v981
        %1262 = vmatprep.subr.bf16.mxu0 0
        %1263 = vmatpush1.bf16.msra.mxu0 %v982
        %1264 = vmatprep.subr.bf16.mxu0 0
        %1265 = vmatpush1.bf16.msra.mxu0 %v983
        %1266 = vmatprep.subr.bf16.mxu0 0
        %1267 = vmatpush1.bf16.msra.mxu0 %v984
        %1268 = vmatprep.subr.bf16.mxu0 0
        %1269 = vmatpush1.bf16.msra.mxu0 %v985
        %1270 = vmatprep.subr.bf16.mxu0 0
        %1271 = vmatpush1.bf16.msra.mxu0 %v986
        %1272 = vmatprep.subr.bf16.mxu0 0
        %1273 = vmatpush1.bf16.msra.mxu0 %v987
        %1274 = vmatprep.subr.bf16.mxu0 0
        %1275 = vmatpush1.bf16.msra.mxu0 %v988
        %1276 = vmatprep.subr.bf16.mxu0 0
        %1277 = vmatpush1.bf16.msra.mxu0 %v989
        %1278 = vmatprep.subr.bf16.mxu0 0
        %1279 = vmatpush1.bf16.msra.mxu0 %v990
        %1280 = vmatprep.subr.bf16.mxu0 0
        %1281 = vmatpush1.bf16.msra.mxu0 %v991
        %1282 = vmatprep.subr.bf16.mxu0 0
        %1283 = vmatpush1.bf16.msra.mxu0 %v992
        %1284 = vmatprep.mubr.bf16.mxu0 %v616
        %1285 = vmatmul.mubr.bf16.gmra.mrb[0].mxu0 %v615
        %v1286 = vpop.f32.mrb[0].mxu0
        %v1287 = vadd.f32 %v1222, %v1286
        %v1288 = vpop.f32.mrb[0].mxu0
        %v1289 = vpop.f32.mrb[0].mxu0
        %v1290 = vadd.f32 %v1225, %v1289
        %v1291 = vpop.f32.mrb[0].mxu0
        %1292 = vmatprep.mubr.bf16.mxu0 %v624
        %1293 = vmatmul.mubr.bf16.gmra.mrb[0].mxu0 %v623
        %v1294 = vpop.f32.mrb[0].mxu0
        %v1295 = vadd.f32 %v1230, %v1294
        %v1296 = vpop.f32.mrb[0].mxu0
        %v1297 = vpop.f32.mrb[0].mxu0
        %v1298 = vadd.f32 %v1233, %v1297
        %v1299 = vpop.f32.mrb[0].mxu0
        %1300 = vmatprep.mubr.bf16.mxu0 %v632
        %1301 = vmatmul.mubr.bf16.gmra.mrb[0].mxu0 %v631
        %v1302 = vpop.f32.mrb[0].mxu0
        %v1303 = vadd.f32 %v1238, %v1302
        %v1304 = vpop.f32.mrb[0].mxu0
        %v1305 = vpop.f32.mrb[0].mxu0
        %v1306 = vadd.f32 %v1241, %v1305
        %v1307 = vpop.f32.mrb[0].mxu0
        %1308 = vmatprep.mubr.bf16.mxu0 %v640
        %1309 = vmatmul.mubr.bf16.gmra.mrb[0].mxu0 %v639
        %v1310 = vpop.f32.mrb[0].mxu0
        %v1311 = vadd.f32 %v1246, %v1310
        %v1312 = vpop.f32.mrb[0].mxu0
        %v1313 = vpop.f32.mrb[0].mxu0
        %v1314 = vadd.f32 %v1249, %v1313
        %v1315 = vpop.f32.mrb[0].mxu0
        %1316 = vdwg.mxu0
        %v1317 = vld [vmem:[#allocation6] sm:$0xf]
        %v1318 = vld [vmem:[#allocation6 + $0x4] sm:$0xf]
        %v1319 = vld [vmem:[#allocation6 + $0x8] sm:$0xf]
        %v1320 = vld [vmem:[#allocation6 + $0xc] sm:$0xf]
        %v1321 = vld [vmem:[#allocation6 + $0x10] sm:$0xf]
        %v1322 = vld [vmem:[#allocation6 + $0x14] sm:$0xf]
        %v1323 = vld [vmem:[#allocation6 + $0x18] sm:$0xf]
        %v1324 = vld [vmem:[#allocation6 + $0x1c] sm:$0xf]
        %v1325 = vld [vmem:[#allocation6 + $0x20] sm:$0xf]
        %v1326 = vld [vmem:[#allocation6 + $0x24] sm:$0xf]
        %v1327 = vld [vmem:[#allocation6 + $0x28] sm:$0xf]
        %v1328 = vld [vmem:[#allocation6 + $0x2c] sm:$0xf]
        %v1329 = vld [vmem:[#allocation6 + $0x30] sm:$0xf]
        %v1330 = vld [vmem:[#allocation6 + $0x34] sm:$0xf]
        %v1331 = vld [vmem:[#allocation6 + $0x38] sm:$0xf]
        %v1332 = vld [vmem:[#allocation6 + $0x3c] sm:$0xf]
        %v1333 = vld [vmem:[#allocation9] sm:$0xf]
        %v1334 = vld [vmem:[#allocation9 + $0x4] sm:$0xf]
        %v1335 = vld [vmem:[#allocation9 + $0x8] sm:$0xf]
        %v1336 = vld [vmem:[#allocation9 + $0xc] sm:$0xf]
        %v1337 = vld [vmem:[#allocation9 + $0x10] sm:$0xf]
        %v1338 = vld [vmem:[#allocation9 + $0x14] sm:$0xf]
        %v1339 = vld [vmem:[#allocation9 + $0x18] sm:$0xf]
        %v1340 = vld [vmem:[#allocation9 + $0x1c] sm:$0xf]
        %v1341 = vld [vmem:[#allocation9 + $0x20] sm:$0xf]
        %v1342 = vld [vmem:[#allocation9 + $0x24] sm:$0xf]
        %v1343 = vld [vmem:[#allocation9 + $0x28] sm:$0xf]
        %v1344 = vld [vmem:[#allocation9 + $0x2c] sm:$0xf]
        %v1345 = vld [vmem:[#allocation9 + $0x30] sm:$0xf]
        %v1346 = vld [vmem:[#allocation9 + $0x34] sm:$0xf]
        %v1347 = vld [vmem:[#allocation9 + $0x38] sm:$0xf]
        %v1348 = vld [vmem:[#allocation9 + $0x3c] sm:$0xf]
        %v1349 = vld [vmem:[%s5] sm:$0x1]
        %v1351 = vlaneseq
        %v1352 = vshrl.u32 %v1351, 7
        %v1353 = vsub.s32 0, %v1352
        %v1354 = vrot.slane %v1349, %v1353
        %v1372 = vunpack.c.l.b16 %v1317
        %v1373 = vunpack.c.l.b16 %v1318
        %v1374 = vunpack.c.l.b16 %v1319
        %v1375 = vunpack.c.l.b16 %v1320
        %v1376 = vunpack.c.l.b16 %v1321
        %v1377 = vunpack.c.l.b16 %v1322
        %v1378 = vunpack.c.l.b16 %v1323
        %v1379 = vunpack.c.l.b16 %v1324
        %v1380 = vunpack.c.l.b16 %v1325
        %v1381 = vunpack.c.l.b16 %v1326
        %v1382 = vunpack.c.l.b16 %v1327
        %v1383 = vunpack.c.l.b16 %v1328
        %v1384 = vunpack.c.l.b16 %v1329
        %v1385 = vunpack.c.l.b16 %v1330
        %v1386 = vunpack.c.l.b16 %v1331
        %v1387 = vunpack.c.l.b16 %v1332
        %v1388 = vpack.c.b16 %v1373, %v1372
        %v1389 = vpack.c.b16 %v1375, %v1374
        %v1390 = vpack.c.b16 %v1377, %v1376
        %v1391 = vpack.c.b16 %v1379, %v1378
        %v1392 = vpack.c.b16 %v1381, %v1380
        %v1393 = vpack.c.b16 %v1383, %v1382
        %v1394 = vpack.c.b16 %v1385, %v1384
        %v1395 = vpack.c.b16 %v1387, %v1386
        %v1420 = vunpack.c.l.b16 %v1333
        %v1421 = vunpack.c.l.b16 %v1334
        %v1422 = vunpack.c.l.b16 %v1335
        %v1423 = vunpack.c.l.b16 %v1336
        %v1424 = vunpack.c.l.b16 %v1337
        %v1425 = vunpack.c.l.b16 %v1338
        %v1426 = vunpack.c.l.b16 %v1339
        %v1427 = vunpack.c.l.b16 %v1340
        %v1428 = vunpack.c.l.b16 %v1341
        %v1429 = vunpack.c.l.b16 %v1342
        %v1430 = vunpack.c.l.b16 %v1343
        %v1431 = vunpack.c.l.b16 %v1344
        %v1432 = vunpack.c.l.b16 %v1345
        %v1433 = vunpack.c.l.b16 %v1346
        %v1434 = vunpack.c.l.b16 %v1347
        %v1435 = vunpack.c.l.b16 %v1348
        %v1436 = vpack.c.b16 %v1421, %v1420
        %v1437 = vpack.c.b16 %v1423, %v1422
        %v1438 = vpack.c.b16 %v1425, %v1424
        %v1439 = vpack.c.b16 %v1427, %v1426
        %v1440 = vpack.c.b16 %v1429, %v1428
        %v1441 = vpack.c.b16 %v1431, %v1430
        %v1442 = vpack.c.b16 %v1433, %v1432
        %v1443 = vpack.c.b16 %v1435, %v1434
        %1452 = vmatprep.subr.bf16.mxu0 0
        %1453 = vmatpush1.bf16.msra.mxu0 %v1436
        %1454 = vmatprep.subr.bf16.mxu0 0
        %1455 = vmatpush1.bf16.msra.mxu0 %v1437
        %1456 = vmatprep.subr.bf16.mxu0 0
        %1457 = vmatpush1.bf16.msra.mxu0 %v1438
        %1458 = vmatprep.subr.bf16.mxu0 0
        %1459 = vmatpush1.bf16.msra.mxu0 %v1439
        %1460 = vmatprep.subr.bf16.mxu0 0
        %1461 = vmatpush1.bf16.msra.mxu0 %v1440
        %1462 = vmatprep.subr.bf16.mxu0 0
        %1463 = vmatpush1.bf16.msra.mxu0 %v1441
        %1464 = vmatprep.subr.bf16.mxu0 0
        %1465 = vmatpush1.bf16.msra.mxu0 %v1442
        %1466 = vmatprep.subr.bf16.mxu0 0
        %1467 = vmatpush1.bf16.msra.mxu0 %v1443
        %1468 = vmatprep.subr.bf16.mxu0 0
        %1469 = vmatpush1.bf16.msra.mxu0 0
        %1470 = vmatprep.subr.bf16.mxu0 0
        %1471 = vmatpush1.bf16.msra.mxu0 0
        %1472 = vmatprep.subr.bf16.mxu0 0
        %1473 = vmatpush1.bf16.msra.mxu0 0
        %1474 = vmatprep.subr.bf16.mxu0 0
        %1475 = vmatpush1.bf16.msra.mxu0 0
        %1476 = vmatprep.subr.bf16.mxu0 0
        %1477 = vmatpush1.bf16.msra.mxu0 0
        %1478 = vmatprep.subr.bf16.mxu0 0
        %1479 = vmatpush1.bf16.msra.mxu0 0
        %1480 = vmatprep.subr.bf16.mxu0 0
        %1481 = vmatpush1.bf16.msra.mxu0 0
        %1482 = vmatprep.subr.bf16.mxu0 0
        %1483 = vmatpush1.bf16.msra.mxu0 0
        %1484 = vmatprep.mubr.bf16.mxu0 0
        %1485 = vmatmul.mubr.bf16.gmra.mrb[0].mxu0 %v1388
        %v1486 = vpop.f32.mrb[0].mxu0
        %v1487 = vadd.f32 %v1354, %v1486
        %v1488 = vpop.f32.mrb[0].mxu0
        %v1489 = vpop.f32.mrb[0].mxu0
        %v1490 = vadd.f32 %v1354, %v1489
        %v1491 = vpop.f32.mrb[0].mxu0
        %1492 = vmatprep.mubr.bf16.mxu0 0
        %1493 = vmatmul.mubr.bf16.gmra.mrb[0].mxu0 %v1389
        %v1494 = vpop.f32.mrb[0].mxu0
        %v1495 = vadd.f32 %v1354, %v1494
        %v1496 = vpop.f32.mrb[0].mxu0
        %v1497 = vpop.f32.mrb[0].mxu0
        %v1498 = vadd.f32 %v1354, %v1497
        %v1499 = vpop.f32.mrb[0].mxu0
        %1500 = vmatprep.mubr.bf16.mxu0 0
        %1501 = vmatmul.mubr.bf16.gmra.mrb[0].mxu0 %v1390
        %v1502 = vpop.f32.mrb[0].mxu0
        %v1503 = vadd.f32 %v1354, %v1502
        %v1504 = vpop.f32.mrb[0].mxu0
        %v1505 = vpop.f32.mrb[0].mxu0
        %v1506 = vadd.f32 %v1354, %v1505
        %v1507 = vpop.f32.mrb[0].mxu0
        %1508 = vmatprep.mubr.bf16.mxu0 0
        %1509 = vmatmul.mubr.bf16.gmra.mrb[0].mxu0 %v1391
        %v1510 = vpop.f32.mrb[0].mxu0
        %v1511 = vadd.f32 %v1354, %v1510
        %v1512 = vpop.f32.mrb[0].mxu0
        %v1513 = vpop.f32.mrb[0].mxu0
        %v1514 = vadd.f32 %v1354, %v1513
        %v1515 = vpop.f32.mrb[0].mxu0
        %1516 = vmatprep.mubr.bf16.mxu0 0
        %1517 = vmatmul.mubr.bf16.gmra.mrb[0].mxu0 %v1392
        %v1518 = vpop.f32.mrb[0].mxu0
        %v1519 = vadd.f32 %v1354, %v1518
        %v1520 = vpop.f32.mrb[0].mxu0
        %v1521 = vpop.f32.mrb[0].mxu0
        %v1522 = vadd.f32 %v1354, %v1521
        %v1523 = vpop.f32.mrb[0].mxu0
        %1524 = vmatprep.mubr.bf16.mxu0 0
        %1525 = vmatmul.mubr.bf16.gmra.mrb[0].mxu0 %v1393
        %v1526 = vpop.f32.mrb[0].mxu0
        %v1527 = vadd.f32 %v1354, %v1526
        %v1528 = vpop.f32.mrb[0].mxu0
        %v1529 = vpop.f32.mrb[0].mxu0
        %v1530 = vadd.f32 %v1354, %v1529
        %v1531 = vpop.f32.mrb[0].mxu0
        %1532 = vmatprep.mubr.bf16.mxu0 0
        %1533 = vmatmul.mubr.bf16.gmra.mrb[0].mxu0 %v1394
        %v1534 = vpop.f32.mrb[0].mxu0
        %v1535 = vadd.f32 %v1354, %v1534
        %v1536 = vpop.f32.mrb[0].mxu0
        %v1537 = vpop.f32.mrb[0].mxu0
        %v1538 = vadd.f32 %v1354, %v1537
        %v1539 = vpop.f32.mrb[0].mxu0
        %1540 = vmatprep.mubr.bf16.mxu0 0
        %1541 = vmatmul.mubr.bf16.gmra.mrb[0].mxu0 %v1395
        %v1542 = vpop.f32.mrb[0].mxu0
        %v1543 = vadd.f32 %v1354, %v1542
        %v1544 = vpop.f32.mrb[0].mxu0
        %v1545 = vpop.f32.mrb[0].mxu0
        %v1546 = vadd.f32 %v1354, %v1545
        %v1547 = vpop.f32.mrb[0].mxu0
        %1548 = vdwg.mxu0
        %s1549 = sld [smem:[#allocation2]]
        %v1550 = vmul.f32 %v1287, %v1287
        %v1551 = vmul.f32 %v1290, %v1290
        %v1552 = vmul.f32 %v1295, %v1295
        %v1553 = vmul.f32 %v1298, %v1298
        %v1554 = vmul.f32 %v1303, %v1303
        %v1555 = vmul.f32 %v1306, %v1306
        %v1556 = vmul.f32 %v1311, %v1311
        %v1557 = vmul.f32 %v1314, %v1314
        %1558 = vadd.xlane.f32.xlu0 %v1550
        %v1559 = vpop.xlane.xlu0 %1558
        %1560 = vadd.xlane.f32.xlu0 %v1551
        %v1561 = vpop.xlane.xlu0 %1560
        %1562 = vadd.xlane.f32.xlu0 %v1552
        %v1563 = vpop.xlane.xlu0 %1562
        %1564 = vadd.xlane.f32.xlu0 %v1553
        %v1565 = vpop.xlane.xlu0 %1564
        %1566 = vadd.xlane.f32.xlu0 %v1554
        %v1567 = vpop.xlane.xlu0 %1566
        %1568 = vadd.xlane.f32.xlu0 %v1555
        %v1569 = vpop.xlane.xlu0 %1568
        %1570 = vadd.xlane.f32.xlu0 %v1556
        %v1571 = vpop.xlane.xlu0 %1570
        %1572 = vadd.xlane.f32.xlu0 %v1557
        %v1573 = vpop.xlane.xlu0 %1572
        %v1574 = vadd.f32 %v1559, 1e-12
        %v1575 = vadd.f32 %v1561, 1e-12
        %v1576 = vadd.f32 %v1563, 1e-12
        %v1577 = vadd.f32 %v1565, 1e-12
        %v1578 = vadd.f32 %v1567, 1e-12
        %v1579 = vadd.f32 %v1569, 1e-12
        %v1580 = vadd.f32 %v1571, 1e-12
        %v1581 = vadd.f32 %v1573, 1e-12
        %v1582 = vrsqrt.pop %v1574
        %v1583 = vrsqrt.pop %v1575
        %v1584 = vrsqrt.pop %v1576
        %v1585 = vrsqrt.pop %v1577
        %v1586 = vrsqrt.pop %v1578
        %v1587 = vrsqrt.pop %v1579
        %v1588 = vrsqrt.pop %v1580
        %v1589 = vrsqrt.pop %v1581
        %v1590 = vstv %s1549
        %v1591 = vmul.f32 %v1590, %v1582
        %v1592 = vmul.f32 %v1590, %v1583
        %v1593 = vmul.f32 %v1590, %v1584
        %v1594 = vmul.f32 %v1590, %v1585
        %v1595 = vmul.f32 %v1590, %v1586
        %v1596 = vmul.f32 %v1590, %v1587
        %v1597 = vmul.f32 %v1590, %v1588
        %v1598 = vmul.f32 %v1590, %v1589
        %v1599 = vmul.f32 %v1287, %v1591
        %v1600 = vmul.f32 %v1290, %v1592
        %v1601 = vmul.f32 %v1295, %v1593
        %v1602 = vmul.f32 %v1298, %v1594
        %v1603 = vmul.f32 %v1303, %v1595
        %v1604 = vmul.f32 %v1306, %v1596
        %v1605 = vmul.f32 %v1311, %v1597
        %v1606 = vmul.f32 %v1314, %v1598
        %v1607 = vmul.f32 %v1487, %v1487
        %v1608 = vmul.f32 %v1490, %v1490
        %v1609 = vmul.f32 %v1495, %v1495
        %v1610 = vmul.f32 %v1498, %v1498
        %v1611 = vmul.f32 %v1503, %v1503
        %v1612 = vmul.f32 %v1506, %v1506
        %v1613 = vmul.f32 %v1511, %v1511
        %v1614 = vmul.f32 %v1514, %v1514
        %v1615 = vmul.f32 %v1519, %v1519
        %v1616 = vmul.f32 %v1522, %v1522
        %v1617 = vmul.f32 %v1527, %v1527
        %v1618 = vmul.f32 %v1530, %v1530
        %v1619 = vmul.f32 %v1535, %v1535
        %v1620 = vmul.f32 %v1538, %v1538
        %v1621 = vmul.f32 %v1543, %v1543
        %v1622 = vmul.f32 %v1546, %v1546
        %1623 = vadd.xlane.f32.xlu0 %v1607
        %v1624 = vpop.xlane.xlu0 %1623
        %1625 = vadd.xlane.f32.xlu0 %v1608
        %v1626 = vpop.xlane.xlu0 %1625
        %1627 = vadd.xlane.f32.xlu0 %v1609
        %v1628 = vpop.xlane.xlu0 %1627
        %1629 = vadd.xlane.f32.xlu0 %v1610
        %v1630 = vpop.xlane.xlu0 %1629
        %1631 = vadd.xlane.f32.xlu0 %v1611
        %v1632 = vpop.xlane.xlu0 %1631
        %1633 = vadd.xlane.f32.xlu0 %v1612
        %v1634 = vpop.xlane.xlu0 %1633
        %1635 = vadd.xlane.f32.xlu0 %v1613
        %v1636 = vpop.xlane.xlu0 %1635
        %1637 = vadd.xlane.f32.xlu0 %v1614
        %v1638 = vpop.xlane.xlu0 %1637
        %1639 = vadd.xlane.f32.xlu0 %v1615
        %v1640 = vpop.xlane.xlu0 %1639
        %1641 = vadd.xlane.f32.xlu0 %v1616
        %v1642 = vpop.xlane.xlu0 %1641
        %1643 = vadd.xlane.f32.xlu0 %v1617
        %v1644 = vpop.xlane.xlu0 %1643
        %1645 = vadd.xlane.f32.xlu0 %v1618
        %v1646 = vpop.xlane.xlu0 %1645
        %1647 = vadd.xlane.f32.xlu0 %v1619
        %v1648 = vpop.xlane.xlu0 %1647
        %1649 = vadd.xlane.f32.xlu0 %v1620
        %v1650 = vpop.xlane.xlu0 %1649
        %1651 = vadd.xlane.f32.xlu0 %v1621
        %v1652 = vpop.xlane.xlu0 %1651
        %1653 = vadd.xlane.f32.xlu0 %v1622
        %v1654 = vpop.xlane.xlu0 %1653
        %v1655 = vadd.f32 %v1624, 1e-12
        %v1656 = vadd.f32 %v1626, 1e-12
        %v1657 = vadd.f32 %v1628, 1e-12
        %v1658 = vadd.f32 %v1630, 1e-12
        %v1659 = vadd.f32 %v1632, 1e-12
        %v1660 = vadd.f32 %v1634, 1e-12
        %v1661 = vadd.f32 %v1636, 1e-12
        %v1662 = vadd.f32 %v1638, 1e-12
        %v1663 = vadd.f32 %v1640, 1e-12
        %v1664 = vadd.f32 %v1642, 1e-12
        %v1665 = vadd.f32 %v1644, 1e-12
        %v1666 = vadd.f32 %v1646, 1e-12
        %v1667 = vadd.f32 %v1648, 1e-12
        %v1668 = vadd.f32 %v1650, 1e-12
        %v1669 = vadd.f32 %v1652, 1e-12
        %v1670 = vadd.f32 %v1654, 1e-12
        %v1671 = vrsqrt.pop %v1655
        %v1672 = vrsqrt.pop %v1656
        %v1673 = vrsqrt.pop %v1657
        %v1674 = vrsqrt.pop %v1658
        %v1675 = vrsqrt.pop %v1659
        %v1676 = vrsqrt.pop %v1660
        %v1677 = vrsqrt.pop %v1661
        %v1678 = vrsqrt.pop %v1662
        %v1679 = vrsqrt.pop %v1663
        %v1680 = vrsqrt.pop %v1664
        %v1681 = vrsqrt.pop %v1665
        %v1682 = vrsqrt.pop %v1666
        %v1683 = vrsqrt.pop %v1667
        %v1684 = vrsqrt.pop %v1668
        %v1685 = vrsqrt.pop %v1669
        %v1686 = vrsqrt.pop %v1670
        %v1687 = vmul.f32 %v1487, %v1671
        %v1688 = vmul.f32 %v1490, %v1672
        %v1689 = vmul.f32 %v1495, %v1673
        %v1690 = vmul.f32 %v1498, %v1674
        %v1691 = vmul.f32 %v1503, %v1675
        %v1692 = vmul.f32 %v1506, %v1676
        %v1693 = vmul.f32 %v1511, %v1677
        %v1694 = vmul.f32 %v1514, %v1678
        %v1695 = vmul.f32 %v1519, %v1679
        %v1696 = vmul.f32 %v1522, %v1680
        %v1697 = vmul.f32 %v1527, %v1681
        %v1698 = vmul.f32 %v1530, %v1682
        %v1699 = vmul.f32 %v1535, %v1683
        %v1700 = vmul.f32 %v1538, %v1684
        %v1701 = vmul.f32 %v1543, %v1685
        %v1702 = vmul.f32 %v1546, %v1686
        %v1703 = vpack.c.bf16 %v1600, %v1599
        %v1704 = vpack.c.bf16 %v1602, %v1601
        %v1705 = vpack.c.bf16 %v1604, %v1603
        %v1706 = vpack.c.bf16 %v1606, %v1605
        %v1707 = vpack.c.bf16 %v1688, %v1687
        %v1708 = vpack.c.bf16 %v1690, %v1689
        %v1709 = vpack.c.bf16 %v1692, %v1691
        %v1710 = vpack.c.bf16 %v1694, %v1693
        %v1711 = vpack.c.bf16 %v1696, %v1695
        %v1712 = vpack.c.bf16 %v1698, %v1697
        %v1713 = vpack.c.bf16 %v1700, %v1699
        %v1714 = vpack.c.bf16 %v1702, %v1701
        %1715 = vmatprep.subr.bf16.mxu0 0
        %1716 = vmatpush1.bf16.xpose.msra.mxu0 %v1707
        %1717 = vmatprep.subr.bf16.mxu0 0
        %1718 = vmatpush1.bf16.xpose.msra.mxu0 %v1708
        %1719 = vmatprep.subr.bf16.mxu0 0
        %1720 = vmatpush1.bf16.xpose.msra.mxu0 %v1709
        %1721 = vmatprep.subr.bf16.mxu0 0
        %1722 = vmatpush1.bf16.xpose.msra.mxu0 %v1710
        %1723 = vmatprep.subr.bf16.mxu0 0
        %1724 = vmatpush1.bf16.xpose.msra.mxu0 %v1711
        %1725 = vmatprep.subr.bf16.mxu0 0
        %1726 = vmatpush1.bf16.xpose.msra.mxu0 %v1712
        %1727 = vmatprep.subr.bf16.mxu0 0
        %1728 = vmatpush1.bf16.xpose.msra.mxu0 %v1713
        %1729 = vmatprep.subr.bf16.mxu0 0
        %1730 = vmatpush1.bf16.xpose.msra.mxu0 %v1714
        %1731 = vmatprep.subr.bf16.mxu0 0
        %1732 = vmatpush1.bf16.xpose.msra.mxu0 0
        %1733 = vmatprep.subr.bf16.mxu0 0
        %1734 = vmatpush1.bf16.xpose.msra.mxu0 0
        %1735 = vmatprep.subr.bf16.mxu0 0
        %1736 = vmatpush1.bf16.xpose.msra.mxu0 0
        %1737 = vmatprep.subr.bf16.mxu0 0
        %1738 = vmatpush1.bf16.xpose.msra.mxu0 0
        %1739 = vmatprep.subr.bf16.mxu0 0
        %1740 = vmatpush1.bf16.xpose.msra.mxu0 0
        %1741 = vmatprep.subr.bf16.mxu0 0
        %1742 = vmatpush1.bf16.xpose.msra.mxu0 0
        %1743 = vmatprep.subr.bf16.mxu0 0
        %1744 = vmatpush1.bf16.xpose.msra.mxu0 0
        %1745 = vmatprep.subr.bf16.mxu0 0
        %1746 = vmatpush1.bf16.xpose.msra.mxu0 0
        %1747 = vmatprep.mubr.bf16.mxu0 0
        %1748 = vmatmul.mubr.bf16.gmra.mrb[0].mxu0 %v1703
        %v1749 = vpop.f32.mrb[0].mxu0
        %v1750 = vadd.f32 0.0, %v1749
        %v1751 = vpop.f32.mrb[0].mxu0
        %v1752 = vpop.f32.mrb[0].mxu0
        %v1753 = vadd.f32 0.0, %v1752
        %v1754 = vpop.f32.mrb[0].mxu0
        %1755 = vmatprep.mubr.bf16.mxu0 0
        %1756 = vmatmul.mubr.bf16.gmra.mrb[0].mxu0 %v1704
        %v1757 = vpop.f32.mrb[0].mxu0
        %v1758 = vadd.f32 0.0, %v1757
        %v1759 = vpop.f32.mrb[0].mxu0
        %v1760 = vpop.f32.mrb[0].mxu0
        %v1761 = vadd.f32 0.0, %v1760
        %v1762 = vpop.f32.mrb[0].mxu0
        %1763 = vmatprep.mubr.bf16.mxu0 0
        %1764 = vmatmul.mubr.bf16.gmra.mrb[0].mxu0 %v1705
        %v1765 = vpop.f32.mrb[0].mxu0
        %v1766 = vadd.f32 0.0, %v1765
        %v1767 = vpop.f32.mrb[0].mxu0
        %v1768 = vpop.f32.mrb[0].mxu0
        %v1769 = vadd.f32 0.0, %v1768
        %v1770 = vpop.f32.mrb[0].mxu0
        %1771 = vmatprep.mubr.bf16.mxu0 0
        %1772 = vmatmul.mubr.bf16.gmra.mrb[0].mxu0 %v1706
        %v1773 = vpop.f32.mrb[0].mxu0
        %v1774 = vadd.f32 0.0, %v1773
        %v1775 = vpop.f32.mrb[0].mxu0
        %v1776 = vpop.f32.mrb[0].mxu0
        %v1777 = vadd.f32 0.0, %v1776
        %v1778 = vpop.f32.mrb[0].mxu0
        %1779 = vdwg.mxu0
        %1780 = vst [vmem:[%s342] sm:$0xff] %v1750
        %1781 = vst [vmem:[%s342 + $0x8] sm:$0xff] %v1753
        %1782 = vst [vmem:[%s342 + $0x10] sm:$0xff] %v1758
        %1783 = vst [vmem:[%s342 + $0x18] sm:$0xff] %v1761
        %1784 = vst [vmem:[%s342 + $0x20] sm:$0xff] %v1766
        %1785 = vst [vmem:[%s342 + $0x28] sm:$0xff] %v1769
        %1786 = vst [vmem:[%s342 + $0x30] sm:$0xff] %v1774
        %1787 = vst [vmem:[%s342 + $0x38] sm:$0xff] %v1777
        %s1788 = sand.u32 %s187, 1
        %s1789 = scalar_lea.sflag [#allocation5], %s1788
        %s1790 = sand.u32 %s187, 1
        %s1791 = smul.addr %s1790, 64
        %s1792 = scalar_lea.vmem [#allocation11], %s1791
        // Predicated region
        $region65: #{tpu_custom_call.1} parent=47 // pred_check
          %p1793 = pneg %p197
        $region66: #{tpu_custom_call.1} parent=47 // pred_check_branch
          %1795 = sbr.rel (%p1793) target = $region68
        $region67: #{tpu_custom_call.1} parent=47 // pred_region
          %s1796 = smul.u32 8, %s27
          %s1798 = ssub.s32 1024, 1024
          %1799 = vsyncadd %s1789, %s1798
          %s1800 = smul.addr %s1796, 128
          %s1801 = scalar_lea.hbm %s7, %s1800
          %s1802 = sshll.u32 %s1792, 4
          %s1803 = int_to_ptr.vmem [resolvable:$true] %s1802
          %1808 = dma.vmem_to_hbm [thread:$0]  %s1803, 1024, %s1801, %s1789, 128, 128, 8
        $region68: #{tpu_custom_call.1} parent=47 // pred_fallthru
          _
      $region48: #{tpu_custom_call.1} parent=5 // pred_fallthru
        _
      %p1809 = scmp.le.s32.totalorder 2, %s22
      // Predicated region
      $region69: #{tpu_custom_call.1} parent=5 // pred_check
        %p1810 = pneg %p1809
      $region70: #{tpu_custom_call.1} parent=5 // pred_check_branch
        %1812 = sbr.rel (%p1810) target = $region72
      $region71: #{tpu_custom_call.1} parent=5 // pred_region
        %s1813 = ssub.s32 %s22, 2
        // Predicated region
        $region73: #{tpu_custom_call.1} parent=71 // pred_check
          %p1814 = pneg %p203
        $region74: #{tpu_custom_call.1} parent=71 // pred_check_branch
          %1816 = sbr.rel (%p1814) target = $region76
        $region75: #{tpu_custom_call.1} parent=71 // pred_region
          %s1817 = sand.u32 %s188, 1
          %s1818 = scalar_lea.sflag [#allocation5], %s1817
          %s1819 = sand.u32 %s188, 1
          %s1820 = smul.addr %s1819, 64
          %s1821 = scalar_lea.vmem [#allocation11], %s1820
          %1822 = dma.done %s1818, 1024
        $region76: #{tpu_custom_call.1} parent=71 // pred_fallthru
          _
      $region72: #{tpu_custom_call.1} parent=5 // pred_fallthru
        _
    $region6: #{tpu_custom_call.1} parent=1 // loop_footer
      %s26 = sadd.s32 1, %s22
    $region7: #{tpu_custom_call.1} parent=1 // loop_footer_branch
      %21 = sbr.rel target = $region3
    $region8: #{tpu_custom_call.1} parent=1 // loop_exit
      _
    %1823 = vsyncpa [#allocation4], 1
    %s1824 = scalar_lea.sflag [#allocation4], 1
    %1825 = vsyncpa %s1824, 1
    %1826 = vsyncpa [#allocation7], 1
    %1827 = vsyncpa [#allocation10], 1
    %1828 = vsyncpa [#allocation5], 1
    %s1829 = scalar_lea.sflag [#allocation5], 1
    %1830 = vsyncpa %s1829, 1

</llo_original>
